<compile_context>
chip_gen: v7x
topology: tpu7x:2x2x1
jax: 0.10.0
libtpu: 0.0.40
codegen_flags: <defaults>
</compile_context>

<pallas_src>
import functools

import jax
import jax.numpy as jnp
from jax.experimental import pallas as pl
from jax.experimental.pallas import tpu as pltpu


# ----------------------------------------------------------------------------
# Fused STL attention kernel (Q projection + per-head attention), one launch.
# ----------------------------------------------------------------------------
def _stl_attention_kernel(q_in_ref, wq_ref, k_ref, v_ref, out_ref, *, num_heads):
    # q_in_ref : (M, d_q)          flattened queries, M = N * T_q
    # wq_ref   : (H, d_q, S)       per-head query projection weights
    # k_ref    : (H, S, Tk)        precomputed tanh(embed)@W_key, pre-scaled by
    #                              1/sqrt(d_k) and pre-transposed
    # v_ref    : (H, Tk, S)        precomputed tanh(embed)@W_value
    # out_ref  : (M, H*S)
    x = q_in_ref[...]                                                   # (M, d_q)

    parts = []
    for h in range(num_heads):                   # static, small head loop
        # Per-head query projection: leading-dim index, no lane slicing.
        q_h = jnp.dot(x, wq_ref[h], preferred_element_type=jnp.float32)    # (M, S)
        # Scores: scale already folded into K, K already transposed.
        s = jnp.dot(q_h, k_ref[h], preferred_element_type=jnp.float32)     # (M, Tk)
        # Max-stabilized softmax; normalization folded after the V matmul.
        s = s - jnp.max(s, axis=-1, keepdims=True)
        e = jnp.exp(s)
        denom = jnp.sum(e, axis=-1, keepdims=True)                         # (M, 1)
        o_h = jnp.dot(e, v_ref[h], preferred_element_type=jnp.float32)     # (M, S)
        parts.append(o_h * pl.reciprocal(denom, approx=False))

    # Single lane-dense 256-lane store instead of 8 masked 32-lane stores.
    out_ref[...] = jnp.concatenate(parts, axis=-1).astype(out_ref.dtype)


# ----------------------------------------------------------------------------
# One-time parameter preparation (batch-invariant, reused across calls).
# ----------------------------------------------------------------------------
def prepare_stl_params(params, *, num_heads, compute_dtype=jnp.float32):
    """Precompute everything that does not depend on the batch.

    Returns per-head, kernel-ready tensors:
      wq_heads : (H, d_q, S)
      k_heads  : (H, S, Tk)   = (tanh(embed) @ W_key) / sqrt(d_k), transposed per head
      v_heads  : (H, Tk, S)   =  tanh(embed) @ W_value
    """
    token_num, d_k = params["embed"].shape
    d_q, U = params["w_query"].shape
    assert U % num_heads == 0
    S = U // num_heads

    keys = jnp.tanh(params["embed"])                                     # (Tk, d_k)
    scale = 1.0 / (float(d_k) ** 0.5)
    k_proj = (keys @ params["w_key"]) * scale                            # (Tk, U)
    v_proj = keys @ params["w_value"]                                    # (Tk, U)

    k_heads = k_proj.reshape(token_num, num_heads, S).transpose(1, 2, 0)     # (H, S, Tk)
    v_heads = v_proj.reshape(token_num, num_heads, S).transpose(1, 0, 2)     # (H, Tk, S)
    wq_heads = params["w_query"].reshape(d_q, num_heads, S).transpose(1, 0, 2)  # (H, d_q, S)

    return {
        "wq_heads": wq_heads.astype(compute_dtype),
        "k_heads": k_heads.astype(compute_dtype),
        "v_heads": v_heads.astype(compute_dtype),
    }


# ----------------------------------------------------------------------------
# Per-call forward: one pallas_call, everything VMEM-resident.
# ----------------------------------------------------------------------------
def stl_forward(inputs, prepped, *, num_heads, gst_index=None):
    """STL.forward for the `inputs is not None` path ("USING REF STL").

    inputs : (N, T_q, d_q) with d_q == tts_embed_dims
    returns: (N, T_q, tts_embed_dims) style embedding
    """
    # TODO(synk): the `inputs is None` branch (hard-coded token-weight mixing /
    # gst_index selection with .cuda() constants) is not implemented here.
    del gst_index
    N, T_q, d_q = inputs.shape
    H, _, S = prepped["wq_heads"].shape
    Tk = prepped["v_heads"].shape[1]
    U = H * S
    M = N * T_q

    out_flat = pl.pallas_call(
        functools.partial(_stl_attention_kernel, num_heads=num_heads),
        out_shape=jax.ShapeDtypeStruct((M, U), jnp.float32),
        grid=(1,),
        in_specs=[
            pl.BlockSpec((M, d_q), lambda i: (0, 0)),
            pl.BlockSpec((H, d_q, S), lambda i: (0, 0, 0)),
            pl.BlockSpec((H, S, Tk), lambda i: (0, 0, 0)),
            pl.BlockSpec((H, Tk, S), lambda i: (0, 0, 0)),
        ],
        out_specs=pl.BlockSpec((M, U), lambda i: (0, 0)),
        compiler_params=pltpu.CompilerParams(
            dimension_semantics=("arbitrary",)),
    )(inputs.reshape(M, d_q), prepped["wq_heads"], prepped["k_heads"],
      prepped["v_heads"])
    return out_flat.reshape(N, T_q, U)


# ----------------------------------------------------------------------------
# Pure-JAX reference mirroring the PyTorch MultiHeadAttention / STL math.
# ----------------------------------------------------------------------------
def stl_reference(inputs, params, *, num_heads):
    N = inputs.shape[0]
    d_k = params["embed"].shape[1]

    keys = jnp.broadcast_to(jnp.tanh(params["embed"])[None],
                            (N,) + params["embed"].shape)               # (N, Tk, d_k)
    q = inputs @ params["w_query"]                                      # (N, Tq, U)
    k = keys @ params["w_key"]                                          # (N, Tk, U)
    v = keys @ params["w_value"]                                        # (N, Tk, U)

    def split_heads(x):                     # (N, T, U) -> (N, h, T, S)
        return jnp.stack(jnp.split(x, num_heads, axis=2), axis=1)

    qh, kh, vh = split_heads(q), split_heads(k), split_heads(v)
    sc = jnp.einsum("nhqs,nhks->nhqk", qh, kh) / (d_k ** 0.5)
    p = jax.nn.softmax(sc, axis=-1)
    o = jnp.einsum("nhqk,nhks->nhqs", p, vh)                            # (N, h, Tq, S)
    o = jnp.concatenate(jnp.split(o, num_heads, axis=1), axis=3)[:, 0]  # (N, Tq, U)
    return o


if __name__ == "__main__":
    key = jax.random.PRNGKey(0)
    k_in, k_emb, k_q, k_k, k_v = jax.random.split(key, 5)

    # hp.* implied by the module: token_num=10, tts_embed_dims=256, num_heads=8
    token_num, embed_dims, num_heads = 10, 256, 8
    d_q = embed_dims                 # MultiHeadAttention(query_dim=tts_embed_dims)
    d_k = embed_dims // num_heads    # key_dim = tts_embed_dims // num_heads
    N, T_q = 2, 1

    inputs = jax.random.normal(k_in, (N, T_q, d_q), dtype=jnp.float32)
    params = {
        # nn.Parameter, init.normal_(std=0.5)
        "embed": (0.5 * jax.random.normal(k_emb, (token_num, d_k))).astype(jnp.float32),
        # nn.Linear(bias=False) weights, stored transposed as (in_features, out_features)
        "w_query": (jax.random.normal(k_q, (d_q, embed_dims)) / jnp.sqrt(d_q)).astype(jnp.float32),
        "w_key": (jax.random.normal(k_k, (d_k, embed_dims)) / jnp.sqrt(d_k)).astype(jnp.float32),
        "w_value": (jax.random.normal(k_v, (d_k, embed_dims)) / jnp.sqrt(d_k)).astype(jnp.float32),
    }

    # One-time (amortized) parameter prep; per-call path is just the kernel.
    prepped = prepare_stl_params(params, num_heads=num_heads,
                                 compute_dtype=jnp.float32)
    prepped = jax.block_until_ready(prepped)

    out = stl_forward(inputs, prepped, num_heads=num_heads)
    out = jax.block_until_ready(out)

    ref = stl_reference(inputs, params, num_heads=num_heads)
    assert out.shape == (N, T_q, embed_dims)
    assert bool(jnp.all(jnp.isfinite(out)))
    err = float(jnp.max(jnp.abs(out - ref)))
    assert bool(jnp.allclose(out, ref, rtol=1e-4, atol=1e-4)), err
    print("KERNEL_OK")
</pallas_src>

<mosaic_0001>
module attributes {stable_mosaic.version = 11 : i64} {
  func.func @_stl_attention_kernel(%arg0: i32, %arg1: memref<2x256xf32, #tpu.memory_space<vmem>>, %arg2: memref<8x256x32xf32, #tpu.memory_space<vmem>>, %arg3: memref<8x32x10xf32, #tpu.memory_space<vmem>>, %arg4: memref<8x10x32xf32, #tpu.memory_space<vmem>>, %arg5: memref<2x256xf32, #tpu.memory_space<vmem>>) attributes {dimension_semantics = [#tpu.dimension_semantics<arbitrary>], iteration_bounds = array<i64: 1>, scalar_prefetch = 0 : i64, scratch_operands = 0 : i64, tpu.core_type = #tpu.core_type<tc>, window_params = [{pipeline_mode = #tpu.pipeline_mode<synchronous>, transform_indices = @transform_0, window_bounds = array<i64: 2, 256>}, {pipeline_mode = #tpu.pipeline_mode<synchronous>, transform_indices = @transform_1, window_bounds = array<i64: 8, 256, 32>}, {pipeline_mode = #tpu.pipeline_mode<synchronous>, transform_indices = @transform_2, window_bounds = array<i64: 8, 32, 10>}, {pipeline_mode = #tpu.pipeline_mode<synchronous>, transform_indices = @transform_3, window_bounds = array<i64: 8, 10, 32>}, {pipeline_mode = #tpu.pipeline_mode<synchronous>, transform_indices = @transform_4, window_bounds = array<i64: 2, 256>}]} {
    %c0 = arith.constant 0 : index
    %c0_0 = arith.constant 0 : index
    %0 = vector.load %arg1[%c0, %c0_0] : memref<2x256xf32, #tpu.memory_space<vmem>>, vector<2x256xf32>
    %c0_1 = arith.constant 0 : index
    %c0_2 = arith.constant 0 : index
    %c0_3 = arith.constant 0 : index
    %1 = vector.load %arg2[%c0_1, %c0_2, %c0_3] : memref<8x256x32xf32, #tpu.memory_space<vmem>>, vector<1x256x32xf32>
    %2 = vector.shape_cast %1 : vector<1x256x32xf32> to vector<256x32xf32>
    %cst = arith.constant dense<0.000000e+00> : vector<2x32xf32>
    %3 = tpu.matmul %0, %2, %cst {dimension_numbers = #tpu.dot_dimension_numbers<[1], [0], [0], [1], [0, 0, 1, 1], [], []>} : vector<2x256xf32>, vector<256x32xf32>, vector<2x32xf32> -> vector<2x32xf32>
    %c0_4 = arith.constant 0 : index
    %c0_5 = arith.constant 0 : index
    %c0_6 = arith.constant 0 : index
    %4 = vector.load %arg3[%c0_4, %c0_5, %c0_6] : memref<8x32x10xf32, #tpu.memory_space<vmem>>, vector<1x32x10xf32>
    %5 = vector.shape_cast %4 : vector<1x32x10xf32> to vector<32x10xf32>
    %cst_7 = arith.constant dense<0.000000e+00> : vector<2x10xf32>
    %6 = tpu.matmul %3, %5, %cst_7 {dimension_numbers = #tpu.dot_dimension_numbers<[1], [0], [0], [1], [0, 0, 1, 1], [], []>} : vector<2x32xf32>, vector<32x10xf32>, vector<2x10xf32> -> vector<2x10xf32>
    %cst_8 = arith.constant dense<0xFF800000> : vector<2xf32>
    %7 = vector.multi_reduction <maximumf>, %6, %cst_8 [1] : vector<2x10xf32> to vector<2xf32>
    %8 = vector.shape_cast %7 : vector<2xf32> to vector<2x1xf32>
    %9 = vector.broadcast %8 : vector<2x1xf32> to vector<2x10xf32>
    %10 = arith.subf %6, %9 : vector<2x10xf32>
    %11 = math.exp %10 : vector<2x10xf32>
    %cst_9 = arith.constant dense<0.000000e+00> : vector<2xf32>
    %12 = vector.multi_reduction <add>, %11, %cst_9 [1] : vector<2x10xf32> to vector<2xf32>
    %13 = vector.shape_cast %12 : vector<2xf32> to vector<2x1xf32>
    %c0_10 = arith.constant 0 : index
    %c0_11 = arith.constant 0 : index
    %c0_12 = arith.constant 0 : index
    %14 = vector.load %arg4[%c0_10, %c0_11, %c0_12] : memref<8x10x32xf32, #tpu.memory_space<vmem>>, vector<1x10x32xf32>
    %15 = vector.shape_cast %14 : vector<1x10x32xf32> to vector<10x32xf32>
    %cst_13 = arith.constant dense<0.000000e+00> : vector<2x32xf32>
    %16 = tpu.matmul %11, %15, %cst_13 {dimension_numbers = #tpu.dot_dimension_numbers<[1], [0], [0], [1], [0, 0, 1, 1], [], []>} : vector<2x10xf32>, vector<10x32xf32>, vector<2x32xf32> -> vector<2x32xf32>
    %17 = tpu.reciprocal %13 : vector<2x1xf32> -> vector<2x1xf32>
    %18 = vector.broadcast %17 : vector<2x1xf32> to vector<2x32xf32>
    %19 = arith.mulf %16, %18 : vector<2x32xf32>
    %c1 = arith.constant 1 : index
    %c0_14 = arith.constant 0 : index
    %c0_15 = arith.constant 0 : index
    %20 = vector.load %arg2[%c1, %c0_14, %c0_15] : memref<8x256x32xf32, #tpu.memory_space<vmem>>, vector<1x256x32xf32>
    %21 = vector.shape_cast %20 : vector<1x256x32xf32> to vector<256x32xf32>
    %cst_16 = arith.constant dense<0.000000e+00> : vector<2x32xf32>
    %22 = tpu.matmul %0, %21, %cst_16 {dimension_numbers = #tpu.dot_dimension_numbers<[1], [0], [0], [1], [0, 0, 1, 1], [], []>} : vector<2x256xf32>, vector<256x32xf32>, vector<2x32xf32> -> vector<2x32xf32>
    %c1_17 = arith.constant 1 : index
    %c0_18 = arith.constant 0 : index
    %c0_19 = arith.constant 0 : index
    %23 = vector.load %arg3[%c1_17, %c0_18, %c0_19] : memref<8x32x10xf32, #tpu.memory_space<vmem>>, vector<1x32x10xf32>
    %24 = vector.shape_cast %23 : vector<1x32x10xf32> to vector<32x10xf32>
    %cst_20 = arith.constant dense<0.000000e+00> : vector<2x10xf32>
    %25 = tpu.matmul %22, %24, %cst_20 {dimension_numbers = #tpu.dot_dimension_numbers<[1], [0], [0], [1], [0, 0, 1, 1], [], []>} : vector<2x32xf32>, vector<32x10xf32>, vector<2x10xf32> -> vector<2x10xf32>
    %cst_21 = arith.constant dense<0xFF800000> : vector<2xf32>
    %26 = vector.multi_reduction <maximumf>, %25, %cst_21 [1] : vector<2x10xf32> to vector<2xf32>
    %27 = vector.shape_cast %26 : vector<2xf32> to vector<2x1xf32>
    %28 = vector.broadcast %27 : vector<2x1xf32> to vector<2x10xf32>
    %29 = arith.subf %25, %28 : vector<2x10xf32>
    %30 = math.exp %29 : vector<2x10xf32>
    %cst_22 = arith.constant dense<0.000000e+00> : vector<2xf32>
    %31 = vector.multi_reduction <add>, %30, %cst_22 [1] : vector<2x10xf32> to vector<2xf32>
    %32 = vector.shape_cast %31 : vector<2xf32> to vector<2x1xf32>
    %c1_23 = arith.constant 1 : index
    %c0_24 = arith.constant 0 : index
    %c0_25 = arith.constant 0 : index
    %33 = vector.load %arg4[%c1_23, %c0_24, %c0_25] : memref<8x10x32xf32, #tpu.memory_space<vmem>>, vector<1x10x32xf32>
    %34 = vector.shape_cast %33 : vector<1x10x32xf32> to vector<10x32xf32>
    %cst_26 = arith.constant dense<0.000000e+00> : vector<2x32xf32>
    %35 = tpu.matmul %30, %34, %cst_26 {dimension_numbers = #tpu.dot_dimension_numbers<[1], [0], [0], [1], [0, 0, 1, 1], [], []>} : vector<2x10xf32>, vector<10x32xf32>, vector<2x32xf32> -> vector<2x32xf32>
    %36 = tpu.reciprocal %32 : vector<2x1xf32> -> vector<2x1xf32>
    %37 = vector.broadcast %36 : vector<2x1xf32> to vector<2x32xf32>
    %38 = arith.mulf %35, %37 : vector<2x32xf32>
    %c2 = arith.constant 2 : index
    %c0_27 = arith.constant 0 : index
    %c0_28 = arith.constant 0 : index
    %39 = vector.load %arg2[%c2, %c0_27, %c0_28] : memref<8x256x32xf32, #tpu.memory_space<vmem>>, vector<1x256x32xf32>
    %40 = vector.shape_cast %39 : vector<1x256x32xf32> to vector<256x32xf32>
    %cst_29 = arith.constant dense<0.000000e+00> : vector<2x32xf32>
    %41 = tpu.matmul %0, %40, %cst_29 {dimension_numbers = #tpu.dot_dimension_numbers<[1], [0], [0], [1], [0, 0, 1, 1], [], []>} : vector<2x256xf32>, vector<256x32xf32>, vector<2x32xf32> -> vector<2x32xf32>
    %c2_30 = arith.constant 2 : index
    %c0_31 = arith.constant 0 : index
    %c0_32 = arith.constant 0 : index
    %42 = vector.load %arg3[%c2_30, %c0_31, %c0_32] : memref<8x32x10xf32, #tpu.memory_space<vmem>>, vector<1x32x10xf32>
    %43 = vector.shape_cast %42 : vector<1x32x10xf32> to vector<32x10xf32>
    %cst_33 = arith.constant dense<0.000000e+00> : vector<2x10xf32>
    %44 = tpu.matmul %41, %43, %cst_33 {dimension_numbers = #tpu.dot_dimension_numbers<[1], [0], [0], [1], [0, 0, 1, 1], [], []>} : vector<2x32xf32>, vector<32x10xf32>, vector<2x10xf32> -> vector<2x10xf32>
    %cst_34 = arith.constant dense<0xFF800000> : vector<2xf32>
    %45 = vector.multi_reduction <maximumf>, %44, %cst_34 [1] : vector<2x10xf32> to vector<2xf32>
    %46 = vector.shape_cast %45 : vector<2xf32> to vector<2x1xf32>
    %47 = vector.broadcast %46 : vector<2x1xf32> to vector<2x10xf32>
    %48 = arith.subf %44, %47 : vector<2x10xf32>
    %49 = math.exp %48 : vector<2x10xf32>
    %cst_35 = arith.constant dense<0.000000e+00> : vector<2xf32>
    %50 = vector.multi_reduction <add>, %49, %cst_35 [1] : vector<2x10xf32> to vector<2xf32>
    %51 = vector.shape_cast %50 : vector<2xf32> to vector<2x1xf32>
    %c2_36 = arith.constant 2 : index
    %c0_37 = arith.constant 0 : index
    %c0_38 = arith.constant 0 : index
    %52 = vector.load %arg4[%c2_36, %c0_37, %c0_38] : memref<8x10x32xf32, #tpu.memory_space<vmem>>, vector<1x10x32xf32>
    %53 = vector.shape_cast %52 : vector<1x10x32xf32> to vector<10x32xf32>
    %cst_39 = arith.constant dense<0.000000e+00> : vector<2x32xf32>
    %54 = tpu.matmul %49, %53, %cst_39 {dimension_numbers = #tpu.dot_dimension_numbers<[1], [0], [0], [1], [0, 0, 1, 1], [], []>} : vector<2x10xf32>, vector<10x32xf32>, vector<2x32xf32> -> vector<2x32xf32>
    %55 = tpu.reciprocal %51 : vector<2x1xf32> -> vector<2x1xf32>
    %56 = vector.broadcast %55 : vector<2x1xf32> to vector<2x32xf32>
    %57 = arith.mulf %54, %56 : vector<2x32xf32>
    %c3 = arith.constant 3 : index
    %c0_40 = arith.constant 0 : index
    %c0_41 = arith.constant 0 : index
    %58 = vector.load %arg2[%c3, %c0_40, %c0_41] : memref<8x256x32xf32, #tpu.memory_space<vmem>>, vector<1x256x32xf32>
    %59 = vector.shape_cast %58 : vector<1x256x32xf32> to vector<256x32xf32>
    %cst_42 = arith.constant dense<0.000000e+00> : vector<2x32xf32>
    %60 = tpu.matmul %0, %59, %cst_42 {dimension_numbers = #tpu.dot_dimension_numbers<[1], [0], [0], [1], [0, 0, 1, 1], [], []>} : vector<2x256xf32>, vector<256x32xf32>, vector<2x32xf32> -> vector<2x32xf32>
    %c3_43 = arith.constant 3 : index
    %c0_44 = arith.constant 0 : index
    %c0_45 = arith.constant 0 : index
    %61 = vector.load %arg3[%c3_43, %c0_44, %c0_45] : memref<8x32x10xf32, #tpu.memory_space<vmem>>, vector<1x32x10xf32>
    %62 = vector.shape_cast %61 : vector<1x32x10xf32> to vector<32x10xf32>
    %cst_46 = arith.constant dense<0.000000e+00> : vector<2x10xf32>
    %63 = tpu.matmul %60, %62, %cst_46 {dimension_numbers = #tpu.dot_dimension_numbers<[1], [0], [0], [1], [0, 0, 1, 1], [], []>} : vector<2x32xf32>, vector<32x10xf32>, vector<2x10xf32> -> vector<2x10xf32>
    %cst_47 = arith.constant dense<0xFF800000> : vector<2xf32>
    %64 = vector.multi_reduction <maximumf>, %63, %cst_47 [1] : vector<2x10xf32> to vector<2xf32>
    %65 = vector.shape_cast %64 : vector<2xf32> to vector<2x1xf32>
    %66 = vector.broadcast %65 : vector<2x1xf32> to vector<2x10xf32>
    %67 = arith.subf %63, %66 : vector<2x10xf32>
    %68 = math.exp %67 : vector<2x10xf32>
    %cst_48 = arith.constant dense<0.000000e+00> : vector<2xf32>
    %69 = vector.multi_reduction <add>, %68, %cst_48 [1] : vector<2x10xf32> to vector<2xf32>
    %70 = vector.shape_cast %69 : vector<2xf32> to vector<2x1xf32>
    %c3_49 = arith.constant 3 : index
    %c0_50 = arith.constant 0 : index
    %c0_51 = arith.constant 0 : index
    %71 = vector.load %arg4[%c3_49, %c0_50, %c0_51] : memref<8x10x32xf32, #tpu.memory_space<vmem>>, vector<1x10x32xf32>
    %72 = vector.shape_cast %71 : vector<1x10x32xf32> to vector<10x32xf32>
    %cst_52 = arith.constant dense<0.000000e+00> : vector<2x32xf32>
    %73 = tpu.matmul %68, %72, %cst_52 {dimension_numbers = #tpu.dot_dimension_numbers<[1], [0], [0], [1], [0, 0, 1, 1], [], []>} : vector<2x10xf32>, vector<10x32xf32>, vector<2x32xf32> -> vector<2x32xf32>
    %74 = tpu.reciprocal %70 : vector<2x1xf32> -> vector<2x1xf32>
    %75 = vector.broadcast %74 : vector<2x1xf32> to vector<2x32xf32>
    %76 = arith.mulf %73, %75 : vector<2x32xf32>
    %c4 = arith.constant 4 : index
    %c0_53 = arith.constant 0 : index
    %c0_54 = arith.constant 0 : index
    %77 = vector.load %arg2[%c4, %c0_53, %c0_54] : memref<8x256x32xf32, #tpu.memory_space<vmem>>, vector<1x256x32xf32>
    %78 = vector.shape_cast %77 : vector<1x256x32xf32> to vector<256x32xf32>
    %cst_55 = arith.constant dense<0.000000e+00> : vector<2x32xf32>
    %79 = tpu.matmul %0, %78, %cst_55 {dimension_numbers = #tpu.dot_dimension_numbers<[1], [0], [0], [1], [0, 0, 1, 1], [], []>} : vector<2x256xf32>, vector<256x32xf32>, vector<2x32xf32> -> vector<2x32xf32>
    %c4_56 = arith.constant 4 : index
    %c0_57 = arith.constant 0 : index
    %c0_58 = arith.constant 0 : index
    %80 = vector.load %arg3[%c4_56, %c0_57, %c0_58] : memref<8x32x10xf32, #tpu.memory_space<vmem>>, vector<1x32x10xf32>
    %81 = vector.shape_cast %80 : vector<1x32x10xf32> to vector<32x10xf32>
    %cst_59 = arith.constant dense<0.000000e+00> : vector<2x10xf32>
    %82 = tpu.matmul %79, %81, %cst_59 {dimension_numbers = #tpu.dot_dimension_numbers<[1], [0], [0], [1], [0, 0, 1, 1], [], []>} : vector<2x32xf32>, vector<32x10xf32>, vector<2x10xf32> -> vector<2x10xf32>
    %cst_60 = arith.constant dense<0xFF800000> : vector<2xf32>
    %83 = vector.multi_reduction <maximumf>, %82, %cst_60 [1] : vector<2x10xf32> to vector<2xf32>
    %84 = vector.shape_cast %83 : vector<2xf32> to vector<2x1xf32>
    %85 = vector.broadcast %84 : vector<2x1xf32> to vector<2x10xf32>
    %86 = arith.subf %82, %85 : vector<2x10xf32>
    %87 = math.exp %86 : vector<2x10xf32>
    %cst_61 = arith.constant dense<0.000000e+00> : vector<2xf32>
    %88 = vector.multi_reduction <add>, %87, %cst_61 [1] : vector<2x10xf32> to vector<2xf32>
    %89 = vector.shape_cast %88 : vector<2xf32> to vector<2x1xf32>
    %c4_62 = arith.constant 4 : index
    %c0_63 = arith.constant 0 : index
    %c0_64 = arith.constant 0 : index
    %90 = vector.load %arg4[%c4_62, %c0_63, %c0_64] : memref<8x10x32xf32, #tpu.memory_space<vmem>>, vector<1x10x32xf32>
    %91 = vector.shape_cast %90 : vector<1x10x32xf32> to vector<10x32xf32>
    %cst_65 = arith.constant dense<0.000000e+00> : vector<2x32xf32>
    %92 = tpu.matmul %87, %91, %cst_65 {dimension_numbers = #tpu.dot_dimension_numbers<[1], [0], [0], [1], [0, 0, 1, 1], [], []>} : vector<2x10xf32>, vector<10x32xf32>, vector<2x32xf32> -> vector<2x32xf32>
    %93 = tpu.reciprocal %89 : vector<2x1xf32> -> vector<2x1xf32>
    %94 = vector.broadcast %93 : vector<2x1xf32> to vector<2x32xf32>
    %95 = arith.mulf %92, %94 : vector<2x32xf32>
    %c5 = arith.constant 5 : index
    %c0_66 = arith.constant 0 : index
    %c0_67 = arith.constant 0 : index
    %96 = vector.load %arg2[%c5, %c0_66, %c0_67] : memref<8x256x32xf32, #tpu.memory_space<vmem>>, vector<1x256x32xf32>
    %97 = vector.shape_cast %96 : vector<1x256x32xf32> to vector<256x32xf32>
    %cst_68 = arith.constant dense<0.000000e+00> : vector<2x32xf32>
    %98 = tpu.matmul %0, %97, %cst_68 {dimension_numbers = #tpu.dot_dimension_numbers<[1], [0], [0], [1], [0, 0, 1, 1], [], []>} : vector<2x256xf32>, vector<256x32xf32>, vector<2x32xf32> -> vector<2x32xf32>
    %c5_69 = arith.constant 5 : index
    %c0_70 = arith.constant 0 : index
    %c0_71 = arith.constant 0 : index
    %99 = vector.load %arg3[%c5_69, %c0_70, %c0_71] : memref<8x32x10xf32, #tpu.memory_space<vmem>>, vector<1x32x10xf32>
    %100 = vector.shape_cast %99 : vector<1x32x10xf32> to vector<32x10xf32>
    %cst_72 = arith.constant dense<0.000000e+00> : vector<2x10xf32>
    %101 = tpu.matmul %98, %100, %cst_72 {dimension_numbers = #tpu.dot_dimension_numbers<[1], [0], [0], [1], [0, 0, 1, 1], [], []>} : vector<2x32xf32>, vector<32x10xf32>, vector<2x10xf32> -> vector<2x10xf32>
    %cst_73 = arith.constant dense<0xFF800000> : vector<2xf32>
    %102 = vector.multi_reduction <maximumf>, %101, %cst_73 [1] : vector<2x10xf32> to vector<2xf32>
    %103 = vector.shape_cast %102 : vector<2xf32> to vector<2x1xf32>
    %104 = vector.broadcast %103 : vector<2x1xf32> to vector<2x10xf32>
    %105 = arith.subf %101, %104 : vector<2x10xf32>
    %106 = math.exp %105 : vector<2x10xf32>
    %cst_74 = arith.constant dense<0.000000e+00> : vector<2xf32>
    %107 = vector.multi_reduction <add>, %106, %cst_74 [1] : vector<2x10xf32> to vector<2xf32>
    %108 = vector.shape_cast %107 : vector<2xf32> to vector<2x1xf32>
    %c5_75 = arith.constant 5 : index
    %c0_76 = arith.constant 0 : index
    %c0_77 = arith.constant 0 : index
    %109 = vector.load %arg4[%c5_75, %c0_76, %c0_77] : memref<8x10x32xf32, #tpu.memory_space<vmem>>, vector<1x10x32xf32>
    %110 = vector.shape_cast %109 : vector<1x10x32xf32> to vector<10x32xf32>
    %cst_78 = arith.constant dense<0.000000e+00> : vector<2x32xf32>
    %111 = tpu.matmul %106, %110, %cst_78 {dimension_numbers = #tpu.dot_dimension_numbers<[1], [0], [0], [1], [0, 0, 1, 1], [], []>} : vector<2x10xf32>, vector<10x32xf32>, vector<2x32xf32> -> vector<2x32xf32>
    %112 = tpu.reciprocal %108 : vector<2x1xf32> -> vector<2x1xf32>
    %113 = vector.broadcast %112 : vector<2x1xf32> to vector<2x32xf32>
    %114 = arith.mulf %111, %113 : vector<2x32xf32>
    %c6 = arith.constant 6 : index
    %c0_79 = arith.constant 0 : index
    %c0_80 = arith.constant 0 : index
    %115 = vector.load %arg2[%c6, %c0_79, %c0_80] : memref<8x256x32xf32, #tpu.memory_space<vmem>>, vector<1x256x32xf32>
    %116 = vector.shape_cast %115 : vector<1x256x32xf32> to vector<256x32xf32>
    %cst_81 = arith.constant dense<0.000000e+00> : vector<2x32xf32>
    %117 = tpu.matmul %0, %116, %cst_81 {dimension_numbers = #tpu.dot_dimension_numbers<[1], [0], [0], [1], [0, 0, 1, 1], [], []>} : vector<2x256xf32>, vector<256x32xf32>, vector<2x32xf32> -> vector<2x32xf32>
    %c6_82 = arith.constant 6 : index
    %c0_83 = arith.constant 0 : index
    %c0_84 = arith.constant 0 : index
    %118 = vector.load %arg3[%c6_82, %c0_83, %c0_84] : memref<8x32x10xf32, #tpu.memory_space<vmem>>, vector<1x32x10xf32>
    %119 = vector.shape_cast %118 : vector<1x32x10xf32> to vector<32x10xf32>
    %cst_85 = arith.constant dense<0.000000e+00> : vector<2x10xf32>
    %120 = tpu.matmul %117, %119, %cst_85 {dimension_numbers = #tpu.dot_dimension_numbers<[1], [0], [0], [1], [0, 0, 1, 1], [], []>} : vector<2x32xf32>, vector<32x10xf32>, vector<2x10xf32> -> vector<2x10xf32>
    %cst_86 = arith.constant dense<0xFF800000> : vector<2xf32>
    %121 = vector.multi_reduction <maximumf>, %120, %cst_86 [1] : vector<2x10xf32> to vector<2xf32>
    %122 = vector.shape_cast %121 : vector<2xf32> to vector<2x1xf32>
    %123 = vector.broadcast %122 : vector<2x1xf32> to vector<2x10xf32>
    %124 = arith.subf %120, %123 : vector<2x10xf32>
    %125 = math.exp %124 : vector<2x10xf32>
    %cst_87 = arith.constant dense<0.000000e+00> : vector<2xf32>
    %126 = vector.multi_reduction <add>, %125, %cst_87 [1] : vector<2x10xf32> to vector<2xf32>
    %127 = vector.shape_cast %126 : vector<2xf32> to vector<2x1xf32>
    %c6_88 = arith.constant 6 : index
    %c0_89 = arith.constant 0 : index
    %c0_90 = arith.constant 0 : index
    %128 = vector.load %arg4[%c6_88, %c0_89, %c0_90] : memref<8x10x32xf32, #tpu.memory_space<vmem>>, vector<1x10x32xf32>
    %129 = vector.shape_cast %128 : vector<1x10x32xf32> to vector<10x32xf32>
    %cst_91 = arith.constant dense<0.000000e+00> : vector<2x32xf32>
    %130 = tpu.matmul %125, %129, %cst_91 {dimension_numbers = #tpu.dot_dimension_numbers<[1], [0], [0], [1], [0, 0, 1, 1], [], []>} : vector<2x10xf32>, vector<10x32xf32>, vector<2x32xf32> -> vector<2x32xf32>
    %131 = tpu.reciprocal %127 : vector<2x1xf32> -> vector<2x1xf32>
    %132 = vector.broadcast %131 : vector<2x1xf32> to vector<2x32xf32>
    %133 = arith.mulf %130, %132 : vector<2x32xf32>
    %c7 = arith.constant 7 : index
    %c0_92 = arith.constant 0 : index
    %c0_93 = arith.constant 0 : index
    %134 = vector.load %arg2[%c7, %c0_92, %c0_93] : memref<8x256x32xf32, #tpu.memory_space<vmem>>, vector<1x256x32xf32>
    %135 = vector.shape_cast %134 : vector<1x256x32xf32> to vector<256x32xf32>
    %cst_94 = arith.constant dense<0.000000e+00> : vector<2x32xf32>
    %136 = tpu.matmul %0, %135, %cst_94 {dimension_numbers = #tpu.dot_dimension_numbers<[1], [0], [0], [1], [0, 0, 1, 1], [], []>} : vector<2x256xf32>, vector<256x32xf32>, vector<2x32xf32> -> vector<2x32xf32>
    %c7_95 = arith.constant 7 : index
    %c0_96 = arith.constant 0 : index
    %c0_97 = arith.constant 0 : index
    %137 = vector.load %arg3[%c7_95, %c0_96, %c0_97] : memref<8x32x10xf32, #tpu.memory_space<vmem>>, vector<1x32x10xf32>
    %138 = vector.shape_cast %137 : vector<1x32x10xf32> to vector<32x10xf32>
    %cst_98 = arith.constant dense<0.000000e+00> : vector<2x10xf32>
    %139 = tpu.matmul %136, %138, %cst_98 {dimension_numbers = #tpu.dot_dimension_numbers<[1], [0], [0], [1], [0, 0, 1, 1], [], []>} : vector<2x32xf32>, vector<32x10xf32>, vector<2x10xf32> -> vector<2x10xf32>
    %cst_99 = arith.constant dense<0xFF800000> : vector<2xf32>
    %140 = vector.multi_reduction <maximumf>, %139, %cst_99 [1] : vector<2x10xf32> to vector<2xf32>
    %141 = vector.shape_cast %140 : vector<2xf32> to vector<2x1xf32>
    %142 = vector.broadcast %141 : vector<2x1xf32> to vector<2x10xf32>
    %143 = arith.subf %139, %142 : vector<2x10xf32>
    %144 = math.exp %143 : vector<2x10xf32>
    %cst_100 = arith.constant dense<0.000000e+00> : vector<2xf32>
    %145 = vector.multi_reduction <add>, %144, %cst_100 [1] : vector<2x10xf32> to vector<2xf32>
    %146 = vector.shape_cast %145 : vector<2xf32> to vector<2x1xf32>
    %c7_101 = arith.constant 7 : index
    %c0_102 = arith.constant 0 : index
    %c0_103 = arith.constant 0 : index
    %147 = vector.load %arg4[%c7_101, %c0_102, %c0_103] : memref<8x10x32xf32, #tpu.memory_space<vmem>>, vector<1x10x32xf32>
    %148 = vector.shape_cast %147 : vector<1x10x32xf32> to vector<10x32xf32>
    %cst_104 = arith.constant dense<0.000000e+00> : vector<2x32xf32>
    %149 = tpu.matmul %144, %148, %cst_104 {dimension_numbers = #tpu.dot_dimension_numbers<[1], [0], [0], [1], [0, 0, 1, 1], [], []>} : vector<2x10xf32>, vector<10x32xf32>, vector<2x32xf32> -> vector<2x32xf32>
    %150 = tpu.reciprocal %146 : vector<2x1xf32> -> vector<2x1xf32>
    %151 = vector.broadcast %150 : vector<2x1xf32> to vector<2x32xf32>
    %152 = arith.mulf %149, %151 : vector<2x32xf32>
    %153 = tpu.concatenate %19, %38, %57, %76, %95, %114, %133, %152 in 1 : vector<2x32xf32>, vector<2x32xf32>, vector<2x32xf32>, vector<2x32xf32>, vector<2x32xf32>, vector<2x32xf32>, vector<2x32xf32>, vector<2x32xf32> -> vector<2x256xf32>
    %c0_105 = arith.constant 0 : index
    %c0_106 = arith.constant 0 : index
    %154 = vector.load %arg5[%c0_105, %c0_106] : memref<2x256xf32, #tpu.memory_space<vmem>>, vector<2x256xf32>
    tpu.vector_store %arg5[%c0_105, %c0_106], %153 {strides = array<i32>} : memref<2x256xf32, #tpu.memory_space<vmem>>, vector<2x256xf32>,
    return
  }
  func.func @transform_0(%arg0: i32) -> (i32, i32) {
    %c0_i32 = arith.constant 0 : i32
    %c0_i32_0 = arith.constant 0 : i32
    %c0_i32_1 = arith.constant 0 : i32
    return %c0_i32, %c0_i32_0 : i32, i32
  }
  func.func @transform_1(%arg0: i32) -> (i32, i32, i32) {
    %c0_i32 = arith.constant 0 : i32
    %c0_i32_0 = arith.constant 0 : i32
    %c0_i32_1 = arith.constant 0 : i32
    %c0_i32_2 = arith.constant 0 : i32
    return %c0_i32, %c0_i32_0, %c0_i32_1 : i32, i32, i32
  }
  func.func @transform_2(%arg0: i32) -> (i32, i32, i32) {
    %c0_i32 = arith.constant 0 : i32
    %c0_i32_0 = arith.constant 0 : i32
    %c0_i32_1 = arith.constant 0 : i32
    %c0_i32_2 = arith.constant 0 : i32
    return %c0_i32, %c0_i32_0, %c0_i32_1 : i32, i32, i32
  }
  func.func @transform_3(%arg0: i32) -> (i32, i32, i32) {
    %c0_i32 = arith.constant 0 : i32
    %c0_i32_0 = arith.constant 0 : i32
    %c0_i32_1 = arith.constant 0 : i32
    %c0_i32_2 = arith.constant 0 : i32
    return %c0_i32, %c0_i32_0, %c0_i32_1 : i32, i32, i32
  }
  func.func @transform_4(%arg0: i32) -> (i32, i32) {
    %c0_i32 = arith.constant 0 : i32
    %c0_i32_0 = arith.constant 0 : i32
    %c0_i32_1 = arith.constant 0 : i32
    return %c0_i32, %c0_i32_0 : i32, i32
  }
}

</mosaic_0001>

<llo_original>
// kernel: tpu_custom_call.1
$region0: #{tpu_custom_call.1}
  #allocation0 [shape = 'u32[]', space=smem, size = 0x4, offset = 0x4, fixed_abs, tag = 'smem constant byte address 0x4 - core index']
  #allocation1 [shape = 'u32[144,128]{1,0:T(1,128)}', space=vmem, size = 0x12000, scoped, tag = 'internal scratch']
  %s0 = inlined_call_operand.vmem [shape: f32[2,256], index: 0, kind: input, shape index: {}]
  %s1 = inlined_call_operand.vmem [shape: f32[8,256,32], index: 1, kind: input, shape index: {}]
  %s2 = inlined_call_operand.vmem [shape: f32[8,32,10], index: 2, kind: input, shape index: {}]
  %s3 = inlined_call_operand.vmem [shape: f32[8,10,32], index: 3, kind: input, shape index: {}]
  %s4 = inlined_call_operand.hbm [shape: f32[2,256], index: 4, kind: output, shape index: {}]
  %s5 = sld [smem:[#allocation0]]
  $region26: #{tpu_custom_call.1} parent=0
    _
  %s7 = ssub.s32 1, %s5
  %s8 = scalar_select 0, %s7, %s5
  $region1: #{tpu_custom_call.1} parent=0
    #allocation2 [shape = 'u8[2048]{0}', space=vmem, size = 0x800, scoped, tag = 'output window, operand 0, single buffered']
    #allocation3 [shape = 's32[1]{0}', space=sflag, size = 0x4, scoped, tag = 'scoped memory for tpu_custom_call.1']
    %9 = vsyncpa [#allocation3], 0
    // Predicated region
    $region2: #{tpu_custom_call.1} parent=1 // pred_check
      _
    $region3: #{tpu_custom_call.1} parent=1 // pred_check_branch
      %11 = sbr.rel (0) target = $region5
    $region4: #{tpu_custom_call.1} parent=1 // pred_region
      _
    $region5: #{tpu_custom_call.1} parent=1 // pred_fallthru
      _
    // Predicated region
    $region6: #{tpu_custom_call.1} parent=1 // pred_check
      _
    $region7: #{tpu_custom_call.1} parent=1 // pred_check_branch
      %13 = sbr.rel (0) target = $region9
    $region8: #{tpu_custom_call.1} parent=1 // pred_region
      _
    $region9: #{tpu_custom_call.1} parent=1 // pred_fallthru
      _
    // Predicated region
    $region10: #{tpu_custom_call.1} parent=1 // pred_check
      _
    $region11: #{tpu_custom_call.1} parent=1 // pred_check_branch
      %15 = sbr.rel (0) target = $region13
    $region12: #{tpu_custom_call.1} parent=1 // pred_region
      _
    $region13: #{tpu_custom_call.1} parent=1 // pred_fallthru
      _
    // Predicated region
    $region14: #{tpu_custom_call.1} parent=1 // pred_check
      _
    $region15: #{tpu_custom_call.1} parent=1 // pred_check_branch
      %17 = sbr.rel (0) target = $region17
    $region16: #{tpu_custom_call.1} parent=1 // pred_region
      _
    $region17: #{tpu_custom_call.1} parent=1 // pred_fallthru
      _
    %v18 = vld [vmem:[%s0] sm:$0xf]
    %v19 = vld [vmem:[%s1] sm:$0xff]
    %v20 = vld [vmem:[%s1 + $0x8] sm:$0xff]
    %v21 = vld [vmem:[%s1 + $0x10] sm:$0xff]
    %v22 = vld [vmem:[%s1 + $0x18] sm:$0xff]
    %v23 = vld [vmem:[%s1 + $0x20] sm:$0xff]
    %v24 = vld [vmem:[%s1 + $0x28] sm:$0xff]
    %v25 = vld [vmem:[%s1 + $0x30] sm:$0xff]
    %v26 = vld [vmem:[%s1 + $0x38] sm:$0xff]
    %v27 = vld [vmem:[%s1 + $0x40] sm:$0xff]
    %v28 = vld [vmem:[%s1 + $0x48] sm:$0xff]
    %v29 = vld [vmem:[%s1 + $0x50] sm:$0xff]
    %v30 = vld [vmem:[%s1 + $0x58] sm:$0xff]
    %v31 = vld [vmem:[%s1 + $0x60] sm:$0xff]
    %v32 = vld [vmem:[%s1 + $0x68] sm:$0xff]
    %v33 = vld [vmem:[%s1 + $0x70] sm:$0xff]
    %v34 = vld [vmem:[%s1 + $0x78] sm:$0xff]
    %v35 = vld [vmem:[%s1 + $0x80] sm:$0xff]
    %v36 = vld [vmem:[%s1 + $0x88] sm:$0xff]
    %v37 = vld [vmem:[%s1 + $0x90] sm:$0xff]
    %v38 = vld [vmem:[%s1 + $0x98] sm:$0xff]
    %v39 = vld [vmem:[%s1 + $0xa0] sm:$0xff]
    %v40 = vld [vmem:[%s1 + $0xa8] sm:$0xff]
    %v41 = vld [vmem:[%s1 + $0xb0] sm:$0xff]
    %v42 = vld [vmem:[%s1 + $0xb8] sm:$0xff]
    %v43 = vld [vmem:[%s1 + $0xc0] sm:$0xff]
    %v44 = vld [vmem:[%s1 + $0xc8] sm:$0xff]
    %v45 = vld [vmem:[%s1 + $0xd0] sm:$0xff]
    %v46 = vld [vmem:[%s1 + $0xd8] sm:$0xff]
    %v47 = vld [vmem:[%s1 + $0xe0] sm:$0xff]
    %v48 = vld [vmem:[%s1 + $0xe8] sm:$0xff]
    %v49 = vld [vmem:[%s1 + $0xf0] sm:$0xff]
    %v50 = vld [vmem:[%s1 + $0xf8] sm:$0xff]
    %v53 = vunpack.c.l.s4 1983009808
    %v54 = vunpack.c.0.s8 %v53
    %v55 = vlaneseq
    %v56 = vshrl.u32 %v55, 7
    %v57 = vsub.s32 %v54, %v56
    %v58 = vrot.slane %v18, %v57
    %v59 = vcombine.high %v58, %v58
    %62 = vmatprep.subr.mxu0 0.0
    %63 = vmatpush1.msra.mxu0 %v19
    %64 = vmatprep.subr.mxu0 0.0
    %65 = vmatpush1.msra.mxu0 %v20
    %66 = vmatprep.subr.mxu0 0.0
    %67 = vmatpush1.msra.mxu0 %v21
    %68 = vmatprep.subr.mxu0 0.0
    %69 = vmatpush1.msra.mxu0 %v22
    %70 = vmatprep.subr.mxu0 0.0
    %71 = vmatpush1.msra.mxu0 %v23
    %72 = vmatprep.subr.mxu0 0.0
    %73 = vmatpush1.msra.mxu0 %v24
    %74 = vmatprep.subr.mxu0 0.0
    %75 = vmatpush1.msra.mxu0 %v25
    %76 = vmatprep.subr.mxu0 0.0
    %77 = vmatpush1.msra.mxu0 %v26
    %78 = vmatprep.subr.mxu0 0.0
    %79 = vmatpush1.msra.mxu0 %v27
    %80 = vmatprep.subr.mxu0 0.0
    %81 = vmatpush1.msra.mxu0 %v28
    %82 = vmatprep.subr.mxu0 0.0
    %83 = vmatpush1.msra.mxu0 %v29
    %84 = vmatprep.subr.mxu0 0.0
    %85 = vmatpush1.msra.mxu0 %v30
    %86 = vmatprep.subr.mxu0 0.0
    %87 = vmatpush1.msra.mxu0 %v31
    %88 = vmatprep.subr.mxu0 0.0
    %89 = vmatpush1.msra.mxu0 %v32
    %90 = vmatprep.subr.mxu0 0.0
    %91 = vmatpush1.msra.mxu0 %v33
    %92 = vmatprep.subr.mxu0 0.0
    %93 = vmatpush1.msra.mxu0 %v34
    %94 = vmatprep.subr.mxu0 0.0
    %95 = vmatpush1.msra.mxu0 %v35
    %96 = vmatprep.subr.mxu0 0.0
    %97 = vmatpush1.msra.mxu0 %v36
    %98 = vmatprep.subr.mxu0 0.0
    %99 = vmatpush1.msra.mxu0 %v37
    %100 = vmatprep.subr.mxu0 0.0
    %101 = vmatpush1.msra.mxu0 %v38
    %102 = vmatprep.subr.mxu0 0.0
    %103 = vmatpush1.msra.mxu0 %v39
    %104 = vmatprep.subr.mxu0 0.0
    %105 = vmatpush1.msra.mxu0 %v40
    %106 = vmatprep.subr.mxu0 0.0
    %107 = vmatpush1.msra.mxu0 %v41
    %108 = vmatprep.subr.mxu0 0.0
    %109 = vmatpush1.msra.mxu0 %v42
    %110 = vmatprep.subr.mxu0 0.0
    %111 = vmatpush1.msra.mxu0 %v43
    %112 = vmatprep.subr.mxu0 0.0
    %113 = vmatpush1.msra.mxu0 %v44
    %114 = vmatprep.subr.mxu0 0.0
    %115 = vmatpush1.msra.mxu0 %v45
    %116 = vmatprep.subr.mxu0 0.0
    %117 = vmatpush1.msra.mxu0 %v46
    %118 = vmatprep.subr.mxu0 0.0
    %119 = vmatpush1.msra.mxu0 %v47
    %120 = vmatprep.subr.mxu0 0.0
    %121 = vmatpush1.msra.mxu0 %v48
    %122 = vmatprep.subr.mxu0 0.0
    %123 = vmatpush1.msra.mxu0 %v49
    %124 = vmatprep.subr.mxu0 0.0
    %125 = vmatpush1.msra.mxu0 %v50
    %126 = vmatprep.mubr.f32.mxu0 %v59
    %127 = vmatmul.mubr.f32.gmra.mrb[0].mxu0 %v58
    %v128 = vpop.f32.mrb[0].mxu0
    %v129 = vadd.f32 0.0, %v128
    %v130 = vpop.f32.mrb[0].mxu0
    %131 = vdwg.mxu0
    %v132 = vld [vmem:[%s2] sm:$0xff]
    %v133 = vld [vmem:[%s2 + $0x8] sm:$0xff]
    %v134 = vld [vmem:[%s2 + $0x10] sm:$0xff]
    %v135 = vld [vmem:[%s2 + $0x18] sm:$0xff]
    %vm136 = vcmask 261120
    %v138 = vsel %vm136, %v129, 0
    %140 = vmatprep.subr.mxu0 0.0
    %141 = vmatpush1.msra.mxu0 %v132
    %142 = vmatprep.subr.mxu0 0.0
    %143 = vmatpush1.msra.mxu0 %v133
    %144 = vmatprep.subr.mxu0 0.0
    %145 = vmatpush1.msra.mxu0 %v134
    %146 = vmatprep.subr.mxu0 0.0
    %147 = vmatpush1.msra.mxu0 %v135
    %148 = vmatprep.subr.mxu0 0.0
    %149 = vmatpush1.msra.mxu0 0.0
    %150 = vmatprep.subr.mxu0 0.0
    %151 = vmatpush1.msra.mxu0 0.0
    %152 = vmatprep.subr.mxu0 0.0
    %153 = vmatpush1.msra.mxu0 0.0
    %154 = vmatprep.subr.mxu0 0.0
    %155 = vmatpush1.msra.mxu0 0.0
    %156 = vmatprep.subr.mxu0 0.0
    %157 = vmatpush1.msra.mxu0 0.0
    %158 = vmatprep.subr.mxu0 0.0
    %159 = vmatpush1.msra.mxu0 0.0
    %160 = vmatprep.subr.mxu0 0.0
    %161 = vmatpush1.msra.mxu0 0.0
    %162 = vmatprep.subr.mxu0 0.0
    %163 = vmatpush1.msra.mxu0 0.0
    %164 = vmatprep.subr.mxu0 0.0
    %165 = vmatpush1.msra.mxu0 0.0
    %166 = vmatprep.subr.mxu0 0.0
    %167 = vmatpush1.msra.mxu0 0.0
    %168 = vmatprep.subr.mxu0 0.0
    %169 = vmatpush1.msra.mxu0 0.0
    %170 = vmatprep.subr.mxu0 0.0
    %171 = vmatpush1.msra.mxu0 0.0
    %172 = vmatprep.subr.mxu0 0.0
    %173 = vmatpush1.msra.mxu0 0.0
    %174 = vmatprep.subr.mxu0 0.0
    %175 = vmatpush1.msra.mxu0 0.0
    %176 = vmatprep.subr.mxu0 0.0
    %177 = vmatpush1.msra.mxu0 0.0
    %178 = vmatprep.subr.mxu0 0.0
    %179 = vmatpush1.msra.mxu0 0.0
    %180 = vmatprep.subr.mxu0 0.0
    %181 = vmatpush1.msra.mxu0 0.0
    %182 = vmatprep.subr.mxu0 0.0
    %183 = vmatpush1.msra.mxu0 0.0
    %184 = vmatprep.subr.mxu0 0.0
    %185 = vmatpush1.msra.mxu0 0.0
    %186 = vmatprep.subr.mxu0 0.0
    %187 = vmatpush1.msra.mxu0 0.0
    %188 = vmatprep.subr.mxu0 0.0
    %189 = vmatpush1.msra.mxu0 0.0
    %190 = vmatprep.subr.mxu0 0.0
    %191 = vmatpush1.msra.mxu0 0.0
    %192 = vmatprep.subr.mxu0 0.0
    %193 = vmatpush1.msra.mxu0 0.0
    %194 = vmatprep.subr.mxu0 0.0
    %195 = vmatpush1.msra.mxu0 0.0
    %196 = vmatprep.subr.mxu0 0.0
    %197 = vmatpush1.msra.mxu0 0.0
    %198 = vmatprep.subr.mxu0 0.0
    %199 = vmatpush1.msra.mxu0 0.0
    %200 = vmatprep.subr.mxu0 0.0
    %201 = vmatpush1.msra.mxu0 0.0
    %202 = vmatprep.subr.mxu0 0.0
    %203 = vmatpush1.msra.mxu0 0.0
    %204 = vmatprep.mubr.f32.mxu0 0.0
    %205 = vmatmul.mubr.f32.gmra.mrb[0].mxu0 %v138
    %v206 = vpop.f32.mrb[0].mxu0
    %v207 = vadd.f32 0.0, %v206
    %v208 = vpop.f32.mrb[0].mxu0
    %209 = vdwg.mxu0
    %vm210 = vcmask 74752
    %v211 = vsel %vm210, %v207, -inf
    %212 = vmax.xlane.f32.xlu0 %v211
    %v213 = vpop.xlane.xlu0 %212
    %v214 = vsub.f32 %v207, %v213
    %v215 = vmul.f32 %v214, 1.442695
    %v216 = vpow.pop %v215
    %v217 = vsel %vm210, %v216, 0.0
    %218 = vadd.xlane.f32.xlu0 %v217
    %v219 = vpop.xlane.xlu0 %218
    %v220 = vld [vmem:[%s3] sm:$0xff]
    %v221 = vld [vmem:[%s3 + $0x8] sm:$0x3]
    %vm222 = vcmask 80896
    %v224 = vsel %vm222, %v216, 0
    %vm226 = vcmask 1041408
    %v228 = vsel %vm226, %v221, 0
    %230 = vmatprep.subr.mxu0 0.0
    %231 = vmatpush1.msra.mxu0 %v220
    %232 = vmatprep.subr.mxu0 0.0
    %233 = vmatpush1.msra.mxu0 %v228
    %234 = vmatprep.subr.mxu0 0.0
    %235 = vmatpush1.msra.mxu0 0.0
    %236 = vmatprep.subr.mxu0 0.0
    %237 = vmatpush1.msra.mxu0 0.0
    %238 = vmatprep.subr.mxu0 0.0
    %239 = vmatpush1.msra.mxu0 0.0
    %240 = vmatprep.subr.mxu0 0.0
    %241 = vmatpush1.msra.mxu0 0.0
    %242 = vmatprep.subr.mxu0 0.0
    %243 = vmatpush1.msra.mxu0 0.0
    %244 = vmatprep.subr.mxu0 0.0
    %245 = vmatpush1.msra.mxu0 0.0
    %246 = vmatprep.subr.mxu0 0.0
    %247 = vmatpush1.msra.mxu0 0.0
    %248 = vmatprep.subr.mxu0 0.0
    %249 = vmatpush1.msra.mxu0 0.0
    %250 = vmatprep.subr.mxu0 0.0
    %251 = vmatpush1.msra.mxu0 0.0
    %252 = vmatprep.subr.mxu0 0.0
    %253 = vmatpush1.msra.mxu0 0.0
    %254 = vmatprep.subr.mxu0 0.0
    %255 = vmatpush1.msra.mxu0 0.0
    %256 = vmatprep.subr.mxu0 0.0
    %257 = vmatpush1.msra.mxu0 0.0
    %258 = vmatprep.subr.mxu0 0.0
    %259 = vmatpush1.msra.mxu0 0.0
    %260 = vmatprep.subr.mxu0 0.0
    %261 = vmatpush1.msra.mxu0 0.0
    %262 = vmatprep.subr.mxu0 0.0
    %263 = vmatpush1.msra.mxu0 0.0
    %264 = vmatprep.subr.mxu0 0.0
    %265 = vmatpush1.msra.mxu0 0.0
    %266 = vmatprep.subr.mxu0 0.0
    %267 = vmatpush1.msra.mxu0 0.0
    %268 = vmatprep.subr.mxu0 0.0
    %269 = vmatpush1.msra.mxu0 0.0
    %270 = vmatprep.subr.mxu0 0.0
    %271 = vmatpush1.msra.mxu0 0.0
    %272 = vmatprep.subr.mxu0 0.0
    %273 = vmatpush1.msra.mxu0 0.0
    %274 = vmatprep.subr.mxu0 0.0
    %275 = vmatpush1.msra.mxu0 0.0
    %276 = vmatprep.subr.mxu0 0.0
    %277 = vmatpush1.msra.mxu0 0.0
    %278 = vmatprep.subr.mxu0 0.0
    %279 = vmatpush1.msra.mxu0 0.0
    %280 = vmatprep.subr.mxu0 0.0
    %281 = vmatpush1.msra.mxu0 0.0
    %282 = vmatprep.subr.mxu0 0.0
    %283 = vmatpush1.msra.mxu0 0.0
    %284 = vmatprep.subr.mxu0 0.0
    %285 = vmatpush1.msra.mxu0 0.0
    %286 = vmatprep.subr.mxu0 0.0
    %287 = vmatpush1.msra.mxu0 0.0
    %288 = vmatprep.subr.mxu0 0.0
    %289 = vmatpush1.msra.mxu0 0.0
    %290 = vmatprep.subr.mxu0 0.0
    %291 = vmatpush1.msra.mxu0 0.0
    %292 = vmatprep.subr.mxu0 0.0
    %293 = vmatpush1.msra.mxu0 0.0
    %294 = vmatprep.mubr.f32.mxu0 0.0
    %295 = vmatmul.mubr.f32.gmra.mrb[0].mxu0 %v224
    %v296 = vpop.f32.mrb[0].mxu0
    %v297 = vadd.f32 0.0, %v296
    %v298 = vpop.f32.mrb[0].mxu0
    %299 = vdwg.mxu0
    %v300 = vrcp.pop %v219
    %v301 = vmul.f32 %v297, %v300
    %s302 = scalar_lea.vmem %s1, 256
    %v303 = vld [vmem:[%s302] sm:$0xff]
    %v304 = vld [vmem:[%s302 + $0x8] sm:$0xff]
    %v305 = vld [vmem:[%s302 + $0x10] sm:$0xff]
    %v306 = vld [vmem:[%s302 + $0x18] sm:$0xff]
    %v307 = vld [vmem:[%s302 + $0x20] sm:$0xff]
    %v308 = vld [vmem:[%s302 + $0x28] sm:$0xff]
    %v309 = vld [vmem:[%s302 + $0x30] sm:$0xff]
    %v310 = vld [vmem:[%s302 + $0x38] sm:$0xff]
    %v311 = vld [vmem:[%s302 + $0x40] sm:$0xff]
    %v312 = vld [vmem:[%s302 + $0x48] sm:$0xff]
    %v313 = vld [vmem:[%s302 + $0x50] sm:$0xff]
    %v314 = vld [vmem:[%s302 + $0x58] sm:$0xff]
    %v315 = vld [vmem:[%s302 + $0x60] sm:$0xff]
    %v316 = vld [vmem:[%s302 + $0x68] sm:$0xff]
    %v317 = vld [vmem:[%s302 + $0x70] sm:$0xff]
    %v318 = vld [vmem:[%s302 + $0x78] sm:$0xff]
    %v319 = vld [vmem:[%s302 + $0x80] sm:$0xff]
    %v320 = vld [vmem:[%s302 + $0x88] sm:$0xff]
    %v321 = vld [vmem:[%s302 + $0x90] sm:$0xff]
    %v322 = vld [vmem:[%s302 + $0x98] sm:$0xff]
    %v323 = vld [vmem:[%s302 + $0xa0] sm:$0xff]
    %v324 = vld [vmem:[%s302 + $0xa8] sm:$0xff]
    %v325 = vld [vmem:[%s302 + $0xb0] sm:$0xff]
    %v326 = vld [vmem:[%s302 + $0xb8] sm:$0xff]
    %v327 = vld [vmem:[%s302 + $0xc0] sm:$0xff]
    %v328 = vld [vmem:[%s302 + $0xc8] sm:$0xff]
    %v329 = vld [vmem:[%s302 + $0xd0] sm:$0xff]
    %v330 = vld [vmem:[%s302 + $0xd8] sm:$0xff]
    %v331 = vld [vmem:[%s302 + $0xe0] sm:$0xff]
    %v332 = vld [vmem:[%s302 + $0xe8] sm:$0xff]
    %v333 = vld [vmem:[%s302 + $0xf0] sm:$0xff]
    %v334 = vld [vmem:[%s302 + $0xf8] sm:$0xff]
    %335 = vmatprep.subr.mxu0 0.0
    %336 = vmatpush1.msra.mxu0 %v303
    %337 = vmatprep.subr.mxu0 0.0
    %338 = vmatpush1.msra.mxu0 %v304
    %339 = vmatprep.subr.mxu0 0.0
    %340 = vmatpush1.msra.mxu0 %v305
    %341 = vmatprep.subr.mxu0 0.0
    %342 = vmatpush1.msra.mxu0 %v306
    %343 = vmatprep.subr.mxu0 0.0
    %344 = vmatpush1.msra.mxu0 %v307
    %345 = vmatprep.subr.mxu0 0.0
    %346 = vmatpush1.msra.mxu0 %v308
    %347 = vmatprep.subr.mxu0 0.0
    %348 = vmatpush1.msra.mxu0 %v309
    %349 = vmatprep.subr.mxu0 0.0
    %350 = vmatpush1.msra.mxu0 %v310
    %351 = vmatprep.subr.mxu0 0.0
    %352 = vmatpush1.msra.mxu0 %v311
    %353 = vmatprep.subr.mxu0 0.0
    %354 = vmatpush1.msra.mxu0 %v312
    %355 = vmatprep.subr.mxu0 0.0
    %356 = vmatpush1.msra.mxu0 %v313
    %357 = vmatprep.subr.mxu0 0.0
    %358 = vmatpush1.msra.mxu0 %v314
    %359 = vmatprep.subr.mxu0 0.0
    %360 = vmatpush1.msra.mxu0 %v315
    %361 = vmatprep.subr.mxu0 0.0
    %362 = vmatpush1.msra.mxu0 %v316
    %363 = vmatprep.subr.mxu0 0.0
    %364 = vmatpush1.msra.mxu0 %v317
    %365 = vmatprep.subr.mxu0 0.0
    %366 = vmatpush1.msra.mxu0 %v318
    %367 = vmatprep.subr.mxu0 0.0
    %368 = vmatpush1.msra.mxu0 %v319
    %369 = vmatprep.subr.mxu0 0.0
    %370 = vmatpush1.msra.mxu0 %v320
    %371 = vmatprep.subr.mxu0 0.0
    %372 = vmatpush1.msra.mxu0 %v321
    %373 = vmatprep.subr.mxu0 0.0
    %374 = vmatpush1.msra.mxu0 %v322
    %375 = vmatprep.subr.mxu0 0.0
    %376 = vmatpush1.msra.mxu0 %v323
    %377 = vmatprep.subr.mxu0 0.0
    %378 = vmatpush1.msra.mxu0 %v324
    %379 = vmatprep.subr.mxu0 0.0
    %380 = vmatpush1.msra.mxu0 %v325
    %381 = vmatprep.subr.mxu0 0.0
    %382 = vmatpush1.msra.mxu0 %v326
    %383 = vmatprep.subr.mxu0 0.0
    %384 = vmatpush1.msra.mxu0 %v327
    %385 = vmatprep.subr.mxu0 0.0
    %386 = vmatpush1.msra.mxu0 %v328
    %387 = vmatprep.subr.mxu0 0.0
    %388 = vmatpush1.msra.mxu0 %v329
    %389 = vmatprep.subr.mxu0 0.0
    %390 = vmatpush1.msra.mxu0 %v330
    %391 = vmatprep.subr.mxu0 0.0
    %392 = vmatpush1.msra.mxu0 %v331
    %393 = vmatprep.subr.mxu0 0.0
    %394 = vmatpush1.msra.mxu0 %v332
    %395 = vmatprep.subr.mxu0 0.0
    %396 = vmatpush1.msra.mxu0 %v333
    %397 = vmatprep.subr.mxu0 0.0
    %398 = vmatpush1.msra.mxu0 %v334
    %399 = vmatprep.mubr.f32.mxu0 %v59
    %400 = vmatmul.mubr.f32.gmra.mrb[0].mxu0 %v58
    %v401 = vpop.f32.mrb[0].mxu0
    %v402 = vadd.f32 0.0, %v401
    %v403 = vpop.f32.mrb[0].mxu0
    %404 = vdwg.mxu0
    %s405 = scalar_lea.vmem %s2, 32
    %v406 = vld [vmem:[%s405] sm:$0xff]
    %v407 = vld [vmem:[%s405 + $0x8] sm:$0xff]
    %v408 = vld [vmem:[%s405 + $0x10] sm:$0xff]
    %v409 = vld [vmem:[%s405 + $0x18] sm:$0xff]
    %v411 = vsel %vm136, %v402, 0
    %413 = vmatprep.subr.mxu0 0.0
    %414 = vmatpush1.msra.mxu0 %v406
    %415 = vmatprep.subr.mxu0 0.0
    %416 = vmatpush1.msra.mxu0 %v407
    %417 = vmatprep.subr.mxu0 0.0
    %418 = vmatpush1.msra.mxu0 %v408
    %419 = vmatprep.subr.mxu0 0.0
    %420 = vmatpush1.msra.mxu0 %v409
    %421 = vmatprep.subr.mxu0 0.0
    %422 = vmatpush1.msra.mxu0 0.0
    %423 = vmatprep.subr.mxu0 0.0
    %424 = vmatpush1.msra.mxu0 0.0
    %425 = vmatprep.subr.mxu0 0.0
    %426 = vmatpush1.msra.mxu0 0.0
    %427 = vmatprep.subr.mxu0 0.0
    %428 = vmatpush1.msra.mxu0 0.0
    %429 = vmatprep.subr.mxu0 0.0
    %430 = vmatpush1.msra.mxu0 0.0
    %431 = vmatprep.subr.mxu0 0.0
    %432 = vmatpush1.msra.mxu0 0.0
    %433 = vmatprep.subr.mxu0 0.0
    %434 = vmatpush1.msra.mxu0 0.0
    %435 = vmatprep.subr.mxu0 0.0
    %436 = vmatpush1.msra.mxu0 0.0
    %437 = vmatprep.subr.mxu0 0.0
    %438 = vmatpush1.msra.mxu0 0.0
    %439 = vmatprep.subr.mxu0 0.0
    %440 = vmatpush1.msra.mxu0 0.0
    %441 = vmatprep.subr.mxu0 0.0
    %442 = vmatpush1.msra.mxu0 0.0
    %443 = vmatprep.subr.mxu0 0.0
    %444 = vmatpush1.msra.mxu0 0.0
    %445 = vmatprep.subr.mxu0 0.0
    %446 = vmatpush1.msra.mxu0 0.0
    %447 = vmatprep.subr.mxu0 0.0
    %448 = vmatpush1.msra.mxu0 0.0
    %449 = vmatprep.subr.mxu0 0.0
    %450 = vmatpush1.msra.mxu0 0.0
    %451 = vmatprep.subr.mxu0 0.0
    %452 = vmatpush1.msra.mxu0 0.0
    %453 = vmatprep.subr.mxu0 0.0
    %454 = vmatpush1.msra.mxu0 0.0
    %455 = vmatprep.subr.mxu0 0.0
    %456 = vmatpush1.msra.mxu0 0.0
    %457 = vmatprep.subr.mxu0 0.0
    %458 = vmatpush1.msra.mxu0 0.0
    %459 = vmatprep.subr.mxu0 0.0
    %460 = vmatpush1.msra.mxu0 0.0
    %461 = vmatprep.subr.mxu0 0.0
    %462 = vmatpush1.msra.mxu0 0.0
    %463 = vmatprep.subr.mxu0 0.0
    %464 = vmatpush1.msra.mxu0 0.0
    %465 = vmatprep.subr.mxu0 0.0
    %466 = vmatpush1.msra.mxu0 0.0
    %467 = vmatprep.subr.mxu0 0.0
    %468 = vmatpush1.msra.mxu0 0.0
    %469 = vmatprep.subr.mxu0 0.0
    %470 = vmatpush1.msra.mxu0 0.0
    %471 = vmatprep.subr.mxu0 0.0
    %472 = vmatpush1.msra.mxu0 0.0
    %473 = vmatprep.subr.mxu0 0.0
    %474 = vmatpush1.msra.mxu0 0.0
    %475 = vmatprep.subr.mxu0 0.0
    %476 = vmatpush1.msra.mxu0 0.0
    %477 = vmatprep.mubr.f32.mxu0 0.0
    %478 = vmatmul.mubr.f32.gmra.mrb[0].mxu0 %v411
    %v479 = vpop.f32.mrb[0].mxu0
    %v480 = vadd.f32 0.0, %v479
    %v481 = vpop.f32.mrb[0].mxu0
    %482 = vdwg.mxu0
    %v483 = vsel %vm210, %v480, -inf
    %484 = vmax.xlane.f32.xlu0 %v483
    %v485 = vpop.xlane.xlu0 %484
    %v486 = vsub.f32 %v480, %v485
    %v487 = vmul.f32 %v486, 1.442695
    %v488 = vpow.pop %v487
    %v489 = vsel %vm210, %v488, 0.0
    %490 = vadd.xlane.f32.xlu0 %v489
    %v491 = vpop.xlane.xlu0 %490
    %s492 = scalar_lea.vmem %s3, 16
    %v493 = vld [vmem:[%s492] sm:$0xff]
    %v494 = vld [vmem:[%s492 + $0x8] sm:$0x3]
    %v496 = vsel %vm222, %v488, 0
    %v499 = vsel %vm226, %v494, 0
    %501 = vmatprep.subr.mxu0 0.0
    %502 = vmatpush1.msra.mxu0 %v493
    %503 = vmatprep.subr.mxu0 0.0
    %504 = vmatpush1.msra.mxu0 %v499
    %505 = vmatprep.subr.mxu0 0.0
    %506 = vmatpush1.msra.mxu0 0.0
    %507 = vmatprep.subr.mxu0 0.0
    %508 = vmatpush1.msra.mxu0 0.0
    %509 = vmatprep.subr.mxu0 0.0
    %510 = vmatpush1.msra.mxu0 0.0
    %511 = vmatprep.subr.mxu0 0.0
    %512 = vmatpush1.msra.mxu0 0.0
    %513 = vmatprep.subr.mxu0 0.0
    %514 = vmatpush1.msra.mxu0 0.0
    %515 = vmatprep.subr.mxu0 0.0
    %516 = vmatpush1.msra.mxu0 0.0
    %517 = vmatprep.subr.mxu0 0.0
    %518 = vmatpush1.msra.mxu0 0.0
    %519 = vmatprep.subr.mxu0 0.0
    %520 = vmatpush1.msra.mxu0 0.0
    %521 = vmatprep.subr.mxu0 0.0
    %522 = vmatpush1.msra.mxu0 0.0
    %523 = vmatprep.subr.mxu0 0.0
    %524 = vmatpush1.msra.mxu0 0.0
    %525 = vmatprep.subr.mxu0 0.0
    %526 = vmatpush1.msra.mxu0 0.0
    %527 = vmatprep.subr.mxu0 0.0
    %528 = vmatpush1.msra.mxu0 0.0
    %529 = vmatprep.subr.mxu0 0.0
    %530 = vmatpush1.msra.mxu0 0.0
    %531 = vmatprep.subr.mxu0 0.0
    %532 = vmatpush1.msra.mxu0 0.0
    %533 = vmatprep.subr.mxu0 0.0
    %534 = vmatpush1.msra.mxu0 0.0
    %535 = vmatprep.subr.mxu0 0.0
    %536 = vmatpush1.msra.mxu0 0.0
    %537 = vmatprep.subr.mxu0 0.0
    %538 = vmatpush1.msra.mxu0 0.0
    %539 = vmatprep.subr.mxu0 0.0
    %540 = vmatpush1.msra.mxu0 0.0
    %541 = vmatprep.subr.mxu0 0.0
    %542 = vmatpush1.msra.mxu0 0.0
    %543 = vmatprep.subr.mxu0 0.0
    %544 = vmatpush1.msra.mxu0 0.0
    %545 = vmatprep.subr.mxu0 0.0
    %546 = vmatpush1.msra.mxu0 0.0
    %547 = vmatprep.subr.mxu0 0.0
    %548 = vmatpush1.msra.mxu0 0.0
    %549 = vmatprep.subr.mxu0 0.0
    %550 = vmatpush1.msra.mxu0 0.0
    %551 = vmatprep.subr.mxu0 0.0
    %552 = vmatpush1.msra.mxu0 0.0
    %553 = vmatprep.subr.mxu0 0.0
    %554 = vmatpush1.msra.mxu0 0.0
    %555 = vmatprep.subr.mxu0 0.0
    %556 = vmatpush1.msra.mxu0 0.0
    %557 = vmatprep.subr.mxu0 0.0
    %558 = vmatpush1.msra.mxu0 0.0
    %559 = vmatprep.subr.mxu0 0.0
    %560 = vmatpush1.msra.mxu0 0.0
    %561 = vmatprep.subr.mxu0 0.0
    %562 = vmatpush1.msra.mxu0 0.0
    %563 = vmatprep.subr.mxu0 0.0
    %564 = vmatpush1.msra.mxu0 0.0
    %565 = vmatprep.mubr.f32.mxu0 0.0
    %566 = vmatmul.mubr.f32.gmra.mrb[0].mxu0 %v496
    %v567 = vpop.f32.mrb[0].mxu0
    %v568 = vadd.f32 0.0, %v567
    %v569 = vpop.f32.mrb[0].mxu0
    %570 = vdwg.mxu0
    %v571 = vrcp.pop %v491
    %v572 = vmul.f32 %v568, %v571
    %s573 = scalar_lea.vmem %s1, 512
    %v574 = vld [vmem:[%s573] sm:$0xff]
    %v575 = vld [vmem:[%s573 + $0x8] sm:$0xff]
    %v576 = vld [vmem:[%s573 + $0x10] sm:$0xff]
    %v577 = vld [vmem:[%s573 + $0x18] sm:$0xff]
    %v578 = vld [vmem:[%s573 + $0x20] sm:$0xff]
    %v579 = vld [vmem:[%s573 + $0x28] sm:$0xff]
    %v580 = vld [vmem:[%s573 + $0x30] sm:$0xff]
    %v581 = vld [vmem:[%s573 + $0x38] sm:$0xff]
    %v582 = vld [vmem:[%s573 + $0x40] sm:$0xff]
    %v583 = vld [vmem:[%s573 + $0x48] sm:$0xff]
    %v584 = vld [vmem:[%s573 + $0x50] sm:$0xff]
    %v585 = vld [vmem:[%s573 + $0x58] sm:$0xff]
    %v586 = vld [vmem:[%s573 + $0x60] sm:$0xff]
    %v587 = vld [vmem:[%s573 + $0x68] sm:$0xff]
    %v588 = vld [vmem:[%s573 + $0x70] sm:$0xff]
    %v589 = vld [vmem:[%s573 + $0x78] sm:$0xff]
    %v590 = vld [vmem:[%s573 + $0x80] sm:$0xff]
    %v591 = vld [vmem:[%s573 + $0x88] sm:$0xff]
    %v592 = vld [vmem:[%s573 + $0x90] sm:$0xff]
    %v593 = vld [vmem:[%s573 + $0x98] sm:$0xff]
    %v594 = vld [vmem:[%s573 + $0xa0] sm:$0xff]
    %v595 = vld [vmem:[%s573 + $0xa8] sm:$0xff]
    %v596 = vld [vmem:[%s573 + $0xb0] sm:$0xff]
    %v597 = vld [vmem:[%s573 + $0xb8] sm:$0xff]
    %v598 = vld [vmem:[%s573 + $0xc0] sm:$0xff]
    %v599 = vld [vmem:[%s573 + $0xc8] sm:$0xff]
    %v600 = vld [vmem:[%s573 + $0xd0] sm:$0xff]
    %v601 = vld [vmem:[%s573 + $0xd8] sm:$0xff]
    %v602 = vld [vmem:[%s573 + $0xe0] sm:$0xff]
    %v603 = vld [vmem:[%s573 + $0xe8] sm:$0xff]
    %v604 = vld [vmem:[%s573 + $0xf0] sm:$0xff]
    %v605 = vld [vmem:[%s573 + $0xf8] sm:$0xff]
    %606 = vmatprep.subr.mxu0 0.0
    %607 = vmatpush1.msra.mxu0 %v574
    %608 = vmatprep.subr.mxu0 0.0
    %609 = vmatpush1.msra.mxu0 %v575
    %610 = vmatprep.subr.mxu0 0.0
    %611 = vmatpush1.msra.mxu0 %v576
    %612 = vmatprep.subr.mxu0 0.0
    %613 = vmatpush1.msra.mxu0 %v577
    %614 = vmatprep.subr.mxu0 0.0
    %615 = vmatpush1.msra.mxu0 %v578
    %616 = vmatprep.subr.mxu0 0.0
    %617 = vmatpush1.msra.mxu0 %v579
    %618 = vmatprep.subr.mxu0 0.0
    %619 = vmatpush1.msra.mxu0 %v580
    %620 = vmatprep.subr.mxu0 0.0
    %621 = vmatpush1.msra.mxu0 %v581
    %622 = vmatprep.subr.mxu0 0.0
    %623 = vmatpush1.msra.mxu0 %v582
    %624 = vmatprep.subr.mxu0 0.0
    %625 = vmatpush1.msra.mxu0 %v583
    %626 = vmatprep.subr.mxu0 0.0
    %627 = vmatpush1.msra.mxu0 %v584
    %628 = vmatprep.subr.mxu0 0.0
    %629 = vmatpush1.msra.mxu0 %v585
    %630 = vmatprep.subr.mxu0 0.0
    %631 = vmatpush1.msra.mxu0 %v586
    %632 = vmatprep.subr.mxu0 0.0
    %633 = vmatpush1.msra.mxu0 %v587
    %634 = vmatprep.subr.mxu0 0.0
    %635 = vmatpush1.msra.mxu0 %v588
    %636 = vmatprep.subr.mxu0 0.0
    %637 = vmatpush1.msra.mxu0 %v589
    %638 = vmatprep.subr.mxu0 0.0
    %639 = vmatpush1.msra.mxu0 %v590
    %640 = vmatprep.subr.mxu0 0.0
    %641 = vmatpush1.msra.mxu0 %v591
    %642 = vmatprep.subr.mxu0 0.0
    %643 = vmatpush1.msra.mxu0 %v592
    %644 = vmatprep.subr.mxu0 0.0
    %645 = vmatpush1.msra.mxu0 %v593
    %646 = vmatprep.subr.mxu0 0.0
    %647 = vmatpush1.msra.mxu0 %v594
    %648 = vmatprep.subr.mxu0 0.0
    %649 = vmatpush1.msra.mxu0 %v595
    %650 = vmatprep.subr.mxu0 0.0
    %651 = vmatpush1.msra.mxu0 %v596
    %652 = vmatprep.subr.mxu0 0.0
    %653 = vmatpush1.msra.mxu0 %v597
    %654 = vmatprep.subr.mxu0 0.0
    %655 = vmatpush1.msra.mxu0 %v598
    %656 = vmatprep.subr.mxu0 0.0
    %657 = vmatpush1.msra.mxu0 %v599
    %658 = vmatprep.subr.mxu0 0.0
    %659 = vmatpush1.msra.mxu0 %v600
    %660 = vmatprep.subr.mxu0 0.0
    %661 = vmatpush1.msra.mxu0 %v601
    %662 = vmatprep.subr.mxu0 0.0
    %663 = vmatpush1.msra.mxu0 %v602
    %664 = vmatprep.subr.mxu0 0.0
    %665 = vmatpush1.msra.mxu0 %v603
    %666 = vmatprep.subr.mxu0 0.0
    %667 = vmatpush1.msra.mxu0 %v604
    %668 = vmatprep.subr.mxu0 0.0
    %669 = vmatpush1.msra.mxu0 %v605
    %670 = vmatprep.mubr.f32.mxu0 %v59
    %671 = vmatmul.mubr.f32.gmra.mrb[0].mxu0 %v58
    %v672 = vpop.f32.mrb[0].mxu0
    %v673 = vadd.f32 0.0, %v672
    %v674 = vpop.f32.mrb[0].mxu0
    %675 = vdwg.mxu0
    %s676 = scalar_lea.vmem %s2, 64
    %v677 = vld [vmem:[%s676] sm:$0xff]
    %v678 = vld [vmem:[%s676 + $0x8] sm:$0xff]
    %v679 = vld [vmem:[%s676 + $0x10] sm:$0xff]
    %v680 = vld [vmem:[%s676 + $0x18] sm:$0xff]
    %v682 = vsel %vm136, %v673, 0
    %684 = vmatprep.subr.mxu0 0.0
    %685 = vmatpush1.msra.mxu0 %v677
    %686 = vmatprep.subr.mxu0 0.0
    %687 = vmatpush1.msra.mxu0 %v678
    %688 = vmatprep.subr.mxu0 0.0
    %689 = vmatpush1.msra.mxu0 %v679
    %690 = vmatprep.subr.mxu0 0.0
    %691 = vmatpush1.msra.mxu0 %v680
    %692 = vmatprep.subr.mxu0 0.0
    %693 = vmatpush1.msra.mxu0 0.0
    %694 = vmatprep.subr.mxu0 0.0
    %695 = vmatpush1.msra.mxu0 0.0
    %696 = vmatprep.subr.mxu0 0.0
    %697 = vmatpush1.msra.mxu0 0.0
    %698 = vmatprep.subr.mxu0 0.0
    %699 = vmatpush1.msra.mxu0 0.0
    %700 = vmatprep.subr.mxu0 0.0
    %701 = vmatpush1.msra.mxu0 0.0
    %702 = vmatprep.subr.mxu0 0.0
    %703 = vmatpush1.msra.mxu0 0.0
    %704 = vmatprep.subr.mxu0 0.0
    %705 = vmatpush1.msra.mxu0 0.0
    %706 = vmatprep.subr.mxu0 0.0
    %707 = vmatpush1.msra.mxu0 0.0
    %708 = vmatprep.subr.mxu0 0.0
    %709 = vmatpush1.msra.mxu0 0.0
    %710 = vmatprep.subr.mxu0 0.0
    %711 = vmatpush1.msra.mxu0 0.0
    %712 = vmatprep.subr.mxu0 0.0
    %713 = vmatpush1.msra.mxu0 0.0
    %714 = vmatprep.subr.mxu0 0.0
    %715 = vmatpush1.msra.mxu0 0.0
    %716 = vmatprep.subr.mxu0 0.0
    %717 = vmatpush1.msra.mxu0 0.0
    %718 = vmatprep.subr.mxu0 0.0
    %719 = vmatpush1.msra.mxu0 0.0
    %720 = vmatprep.subr.mxu0 0.0
    %721 = vmatpush1.msra.mxu0 0.0
    %722 = vmatprep.subr.mxu0 0.0
    %723 = vmatpush1.msra.mxu0 0.0
    %724 = vmatprep.subr.mxu0 0.0
    %725 = vmatpush1.msra.mxu0 0.0
    %726 = vmatprep.subr.mxu0 0.0
    %727 = vmatpush1.msra.mxu0 0.0
    %728 = vmatprep.subr.mxu0 0.0
    %729 = vmatpush1.msra.mxu0 0.0
    %730 = vmatprep.subr.mxu0 0.0
    %731 = vmatpush1.msra.mxu0 0.0
    %732 = vmatprep.subr.mxu0 0.0
    %733 = vmatpush1.msra.mxu0 0.0
    %734 = vmatprep.subr.mxu0 0.0
    %735 = vmatpush1.msra.mxu0 0.0
    %736 = vmatprep.subr.mxu0 0.0
    %737 = vmatpush1.msra.mxu0 0.0
    %738 = vmatprep.subr.mxu0 0.0
    %739 = vmatpush1.msra.mxu0 0.0
    %740 = vmatprep.subr.mxu0 0.0
    %741 = vmatpush1.msra.mxu0 0.0
    %742 = vmatprep.subr.mxu0 0.0
    %743 = vmatpush1.msra.mxu0 0.0
    %744 = vmatprep.subr.mxu0 0.0
    %745 = vmatpush1.msra.mxu0 0.0
    %746 = vmatprep.subr.mxu0 0.0
    %747 = vmatpush1.msra.mxu0 0.0
    %748 = vmatprep.mubr.f32.mxu0 0.0
    %749 = vmatmul.mubr.f32.gmra.mrb[0].mxu0 %v682
    %v750 = vpop.f32.mrb[0].mxu0
    %v751 = vadd.f32 0.0, %v750
    %v752 = vpop.f32.mrb[0].mxu0
    %753 = vdwg.mxu0
    %v754 = vsel %vm210, %v751, -inf
    %755 = vmax.xlane.f32.xlu0 %v754
    %v756 = vpop.xlane.xlu0 %755
    %v757 = vsub.f32 %v751, %v756
    %v758 = vmul.f32 %v757, 1.442695
    %v759 = vpow.pop %v758
    %v760 = vsel %vm210, %v759, 0.0
    %761 = vadd.xlane.f32.xlu0 %v760
    %v762 = vpop.xlane.xlu0 %761
    %s763 = scalar_lea.vmem %s3, 32
    %v764 = vld [vmem:[%s763] sm:$0xff]
    %v765 = vld [vmem:[%s763 + $0x8] sm:$0x3]
    %v767 = vsel %vm222, %v759, 0
    %v770 = vsel %vm226, %v765, 0
    %772 = vmatprep.subr.mxu0 0.0
    %773 = vmatpush1.msra.mxu0 %v764
    %774 = vmatprep.subr.mxu0 0.0
    %775 = vmatpush1.msra.mxu0 %v770
    %776 = vmatprep.subr.mxu0 0.0
    %777 = vmatpush1.msra.mxu0 0.0
    %778 = vmatprep.subr.mxu0 0.0
    %779 = vmatpush1.msra.mxu0 0.0
    %780 = vmatprep.subr.mxu0 0.0
    %781 = vmatpush1.msra.mxu0 0.0
    %782 = vmatprep.subr.mxu0 0.0
    %783 = vmatpush1.msra.mxu0 0.0
    %784 = vmatprep.subr.mxu0 0.0
    %785 = vmatpush1.msra.mxu0 0.0
    %786 = vmatprep.subr.mxu0 0.0
    %787 = vmatpush1.msra.mxu0 0.0
    %788 = vmatprep.subr.mxu0 0.0
    %789 = vmatpush1.msra.mxu0 0.0
    %790 = vmatprep.subr.mxu0 0.0
    %791 = vmatpush1.msra.mxu0 0.0
    %792 = vmatprep.subr.mxu0 0.0
    %793 = vmatpush1.msra.mxu0 0.0
    %794 = vmatprep.subr.mxu0 0.0
    %795 = vmatpush1.msra.mxu0 0.0
    %796 = vmatprep.subr.mxu0 0.0
    %797 = vmatpush1.msra.mxu0 0.0
    %798 = vmatprep.subr.mxu0 0.0
    %799 = vmatpush1.msra.mxu0 0.0
    %800 = vmatprep.subr.mxu0 0.0
    %801 = vmatpush1.msra.mxu0 0.0
    %802 = vmatprep.subr.mxu0 0.0
    %803 = vmatpush1.msra.mxu0 0.0
    %804 = vmatprep.subr.mxu0 0.0
    %805 = vmatpush1.msra.mxu0 0.0
    %806 = vmatprep.subr.mxu0 0.0
    %807 = vmatpush1.msra.mxu0 0.0
    %808 = vmatprep.subr.mxu0 0.0
    %809 = vmatpush1.msra.mxu0 0.0
    %810 = vmatprep.subr.mxu0 0.0
    %811 = vmatpush1.msra.mxu0 0.0
    %812 = vmatprep.subr.mxu0 0.0
    %813 = vmatpush1.msra.mxu0 0.0
    %814 = vmatprep.subr.mxu0 0.0
    %815 = vmatpush1.msra.mxu0 0.0
    %816 = vmatprep.subr.mxu0 0.0
    %817 = vmatpush1.msra.mxu0 0.0
    %818 = vmatprep.subr.mxu0 0.0
    %819 = vmatpush1.msra.mxu0 0.0
    %820 = vmatprep.subr.mxu0 0.0
    %821 = vmatpush1.msra.mxu0 0.0
    %822 = vmatprep.subr.mxu0 0.0
    %823 = vmatpush1.msra.mxu0 0.0
    %824 = vmatprep.subr.mxu0 0.0
    %825 = vmatpush1.msra.mxu0 0.0
    %826 = vmatprep.subr.mxu0 0.0
    %827 = vmatpush1.msra.mxu0 0.0
    %828 = vmatprep.subr.mxu0 0.0
    %829 = vmatpush1.msra.mxu0 0.0
    %830 = vmatprep.subr.mxu0 0.0
    %831 = vmatpush1.msra.mxu0 0.0
    %832 = vmatprep.subr.mxu0 0.0
    %833 = vmatpush1.msra.mxu0 0.0
    %834 = vmatprep.subr.mxu0 0.0
    %835 = vmatpush1.msra.mxu0 0.0
    %836 = vmatprep.mubr.f32.mxu0 0.0
    %837 = vmatmul.mubr.f32.gmra.mrb[0].mxu0 %v767
    %v838 = vpop.f32.mrb[0].mxu0
    %v839 = vadd.f32 0.0, %v838
    %v840 = vpop.f32.mrb[0].mxu0
    %841 = vdwg.mxu0
    %v842 = vrcp.pop %v762
    %v843 = vmul.f32 %v839, %v842
    %s844 = scalar_lea.vmem %s1, 768
    %v845 = vld [vmem:[%s844] sm:$0xff]
    %v846 = vld [vmem:[%s844 + $0x8] sm:$0xff]
    %v847 = vld [vmem:[%s844 + $0x10] sm:$0xff]
    %v848 = vld [vmem:[%s844 + $0x18] sm:$0xff]
    %v849 = vld [vmem:[%s844 + $0x20] sm:$0xff]
    %v850 = vld [vmem:[%s844 + $0x28] sm:$0xff]
    %v851 = vld [vmem:[%s844 + $0x30] sm:$0xff]
    %v852 = vld [vmem:[%s844 + $0x38] sm:$0xff]
    %v853 = vld [vmem:[%s844 + $0x40] sm:$0xff]
    %v854 = vld [vmem:[%s844 + $0x48] sm:$0xff]
    %v855 = vld [vmem:[%s844 + $0x50] sm:$0xff]
    %v856 = vld [vmem:[%s844 + $0x58] sm:$0xff]
    %v857 = vld [vmem:[%s844 + $0x60] sm:$0xff]
    %v858 = vld [vmem:[%s844 + $0x68] sm:$0xff]
    %v859 = vld [vmem:[%s844 + $0x70] sm:$0xff]
    %v860 = vld [vmem:[%s844 + $0x78] sm:$0xff]
    %v861 = vld [vmem:[%s844 + $0x80] sm:$0xff]
    %v862 = vld [vmem:[%s844 + $0x88] sm:$0xff]
    %v863 = vld [vmem:[%s844 + $0x90] sm:$0xff]
    %v864 = vld [vmem:[%s844 + $0x98] sm:$0xff]
    %v865 = vld [vmem:[%s844 + $0xa0] sm:$0xff]
    %v866 = vld [vmem:[%s844 + $0xa8] sm:$0xff]
    %v867 = vld [vmem:[%s844 + $0xb0] sm:$0xff]
    %v868 = vld [vmem:[%s844 + $0xb8] sm:$0xff]
    %v869 = vld [vmem:[%s844 + $0xc0] sm:$0xff]
    %v870 = vld [vmem:[%s844 + $0xc8] sm:$0xff]
    %v871 = vld [vmem:[%s844 + $0xd0] sm:$0xff]
    %v872 = vld [vmem:[%s844 + $0xd8] sm:$0xff]
    %v873 = vld [vmem:[%s844 + $0xe0] sm:$0xff]
    %v874 = vld [vmem:[%s844 + $0xe8] sm:$0xff]
    %v875 = vld [vmem:[%s844 + $0xf0] sm:$0xff]
    %v876 = vld [vmem:[%s844 + $0xf8] sm:$0xff]
    %877 = vmatprep.subr.mxu0 0.0
    %878 = vmatpush1.msra.mxu0 %v845
    %879 = vmatprep.subr.mxu0 0.0
    %880 = vmatpush1.msra.mxu0 %v846
    %881 = vmatprep.subr.mxu0 0.0
    %882 = vmatpush1.msra.mxu0 %v847
    %883 = vmatprep.subr.mxu0 0.0
    %884 = vmatpush1.msra.mxu0 %v848
    %885 = vmatprep.subr.mxu0 0.0
    %886 = vmatpush1.msra.mxu0 %v849
    %887 = vmatprep.subr.mxu0 0.0
    %888 = vmatpush1.msra.mxu0 %v850
    %889 = vmatprep.subr.mxu0 0.0
    %890 = vmatpush1.msra.mxu0 %v851
    %891 = vmatprep.subr.mxu0 0.0
    %892 = vmatpush1.msra.mxu0 %v852
    %893 = vmatprep.subr.mxu0 0.0
    %894 = vmatpush1.msra.mxu0 %v853
    %895 = vmatprep.subr.mxu0 0.0
    %896 = vmatpush1.msra.mxu0 %v854
    %897 = vmatprep.subr.mxu0 0.0
    %898 = vmatpush1.msra.mxu0 %v855
    %899 = vmatprep.subr.mxu0 0.0
    %900 = vmatpush1.msra.mxu0 %v856
    %901 = vmatprep.subr.mxu0 0.0
    %902 = vmatpush1.msra.mxu0 %v857
    %903 = vmatprep.subr.mxu0 0.0
    %904 = vmatpush1.msra.mxu0 %v858
    %905 = vmatprep.subr.mxu0 0.0
    %906 = vmatpush1.msra.mxu0 %v859
    %907 = vmatprep.subr.mxu0 0.0
    %908 = vmatpush1.msra.mxu0 %v860
    %909 = vmatprep.subr.mxu0 0.0
    %910 = vmatpush1.msra.mxu0 %v861
    %911 = vmatprep.subr.mxu0 0.0
    %912 = vmatpush1.msra.mxu0 %v862
    %913 = vmatprep.subr.mxu0 0.0
    %914 = vmatpush1.msra.mxu0 %v863
    %915 = vmatprep.subr.mxu0 0.0
    %916 = vmatpush1.msra.mxu0 %v864
    %917 = vmatprep.subr.mxu0 0.0
    %918 = vmatpush1.msra.mxu0 %v865
    %919 = vmatprep.subr.mxu0 0.0
    %920 = vmatpush1.msra.mxu0 %v866
    %921 = vmatprep.subr.mxu0 0.0
    %922 = vmatpush1.msra.mxu0 %v867
    %923 = vmatprep.subr.mxu0 0.0
    %924 = vmatpush1.msra.mxu0 %v868
    %925 = vmatprep.subr.mxu0 0.0
    %926 = vmatpush1.msra.mxu0 %v869
    %927 = vmatprep.subr.mxu0 0.0
    %928 = vmatpush1.msra.mxu0 %v870
    %929 = vmatprep.subr.mxu0 0.0
    %930 = vmatpush1.msra.mxu0 %v871
    %931 = vmatprep.subr.mxu0 0.0
    %932 = vmatpush1.msra.mxu0 %v872
    %933 = vmatprep.subr.mxu0 0.0
    %934 = vmatpush1.msra.mxu0 %v873
    %935 = vmatprep.subr.mxu0 0.0
    %936 = vmatpush1.msra.mxu0 %v874
    %937 = vmatprep.subr.mxu0 0.0
    %938 = vmatpush1.msra.mxu0 %v875
    %939 = vmatprep.subr.mxu0 0.0
    %940 = vmatpush1.msra.mxu0 %v876
    %941 = vmatprep.mubr.f32.mxu0 %v59
    %942 = vmatmul.mubr.f32.gmra.mrb[0].mxu0 %v58
    %v943 = vpop.f32.mrb[0].mxu0
    %v944 = vadd.f32 0.0, %v943
    %v945 = vpop.f32.mrb[0].mxu0
    %946 = vdwg.mxu0
    %s947 = scalar_lea.vmem %s2, 96
    %v948 = vld [vmem:[%s947] sm:$0xff]
    %v949 = vld [vmem:[%s947 + $0x8] sm:$0xff]
    %v950 = vld [vmem:[%s947 + $0x10] sm:$0xff]
    %v951 = vld [vmem:[%s947 + $0x18] sm:$0xff]
    %v953 = vsel %vm136, %v944, 0
    %955 = vmatprep.subr.mxu0 0.0
    %956 = vmatpush1.msra.mxu0 %v948
    %957 = vmatprep.subr.mxu0 0.0
    %958 = vmatpush1.msra.mxu0 %v949
    %959 = vmatprep.subr.mxu0 0.0
    %960 = vmatpush1.msra.mxu0 %v950
    %961 = vmatprep.subr.mxu0 0.0
    %962 = vmatpush1.msra.mxu0 %v951
    %963 = vmatprep.subr.mxu0 0.0
    %964 = vmatpush1.msra.mxu0 0.0
    %965 = vmatprep.subr.mxu0 0.0
    %966 = vmatpush1.msra.mxu0 0.0
    %967 = vmatprep.subr.mxu0 0.0
    %968 = vmatpush1.msra.mxu0 0.0
    %969 = vmatprep.subr.mxu0 0.0
    %970 = vmatpush1.msra.mxu0 0.0
    %971 = vmatprep.subr.mxu0 0.0
    %972 = vmatpush1.msra.mxu0 0.0
    %973 = vmatprep.subr.mxu0 0.0
    %974 = vmatpush1.msra.mxu0 0.0
    %975 = vmatprep.subr.mxu0 0.0
    %976 = vmatpush1.msra.mxu0 0.0
    %977 = vmatprep.subr.mxu0 0.0
    %978 = vmatpush1.msra.mxu0 0.0
    %979 = vmatprep.subr.mxu0 0.0
    %980 = vmatpush1.msra.mxu0 0.0
    %981 = vmatprep.subr.mxu0 0.0
    %982 = vmatpush1.msra.mxu0 0.0
    %983 = vmatprep.subr.mxu0 0.0
    %984 = vmatpush1.msra.mxu0 0.0
    %985 = vmatprep.subr.mxu0 0.0
    %986 = vmatpush1.msra.mxu0 0.0
    %987 = vmatprep.subr.mxu0 0.0
    %988 = vmatpush1.msra.mxu0 0.0
    %989 = vmatprep.subr.mxu0 0.0
    %990 = vmatpush1.msra.mxu0 0.0
    %991 = vmatprep.subr.mxu0 0.0
    %992 = vmatpush1.msra.mxu0 0.0
    %993 = vmatprep.subr.mxu0 0.0
    %994 = vmatpush1.msra.mxu0 0.0
    %995 = vmatprep.subr.mxu0 0.0
    %996 = vmatpush1.msra.mxu0 0.0
    %997 = vmatprep.subr.mxu0 0.0
    %998 = vmatpush1.msra.mxu0 0.0
    %999 = vmatprep.subr.mxu0 0.0
    %1000 = vmatpush1.msra.mxu0 0.0
    %1001 = vmatprep.subr.mxu0 0.0
    %1002 = vmatpush1.msra.mxu0 0.0
    %1003 = vmatprep.subr.mxu0 0.0
    %1004 = vmatpush1.msra.mxu0 0.0
    %1005 = vmatprep.subr.mxu0 0.0
    %1006 = vmatpush1.msra.mxu0 0.0
    %1007 = vmatprep.subr.mxu0 0.0
    %1008 = vmatpush1.msra.mxu0 0.0
    %1009 = vmatprep.subr.mxu0 0.0
    %1010 = vmatpush1.msra.mxu0 0.0
    %1011 = vmatprep.subr.mxu0 0.0
    %1012 = vmatpush1.msra.mxu0 0.0
    %1013 = vmatprep.subr.mxu0 0.0
    %1014 = vmatpush1.msra.mxu0 0.0
    %1015 = vmatprep.subr.mxu0 0.0
    %1016 = vmatpush1.msra.mxu0 0.0
    %1017 = vmatprep.subr.mxu0 0.0
    %1018 = vmatpush1.msra.mxu0 0.0
    %1019 = vmatprep.mubr.f32.mxu0 0.0
    %1020 = vmatmul.mubr.f32.gmra.mrb[0].mxu0 %v953
    %v1021 = vpop.f32.mrb[0].mxu0
    %v1022 = vadd.f32 0.0, %v1021
    %v1023 = vpop.f32.mrb[0].mxu0
    %1024 = vdwg.mxu0
    %v1025 = vsel %vm210, %v1022, -inf
    %1026 = vmax.xlane.f32.xlu0 %v1025
    %v1027 = vpop.xlane.xlu0 %1026
    %v1028 = vsub.f32 %v1022, %v1027
    %v1029 = vmul.f32 %v1028, 1.442695
    %v1030 = vpow.pop %v1029
    %v1031 = vsel %vm210, %v1030, 0.0
    %1032 = vadd.xlane.f32.xlu0 %v1031
    %v1033 = vpop.xlane.xlu0 %1032
    %s1034 = scalar_lea.vmem %s3, 48
    %v1035 = vld [vmem:[%s1034] sm:$0xff]
    %v1036 = vld [vmem:[%s1034 + $0x8] sm:$0x3]
    %v1038 = vsel %vm222, %v1030, 0
    %v1041 = vsel %vm226, %v1036, 0
    %1043 = vmatprep.subr.mxu0 0.0
    %1044 = vmatpush1.msra.mxu0 %v1035
    %1045 = vmatprep.subr.mxu0 0.0
    %1046 = vmatpush1.msra.mxu0 %v1041
    %1047 = vmatprep.subr.mxu0 0.0
    %1048 = vmatpush1.msra.mxu0 0.0
    %1049 = vmatprep.subr.mxu0 0.0
    %1050 = vmatpush1.msra.mxu0 0.0
    %1051 = vmatprep.subr.mxu0 0.0
    %1052 = vmatpush1.msra.mxu0 0.0
    %1053 = vmatprep.subr.mxu0 0.0
    %1054 = vmatpush1.msra.mxu0 0.0
    %1055 = vmatprep.subr.mxu0 0.0
    %1056 = vmatpush1.msra.mxu0 0.0
    %1057 = vmatprep.subr.mxu0 0.0
    %1058 = vmatpush1.msra.mxu0 0.0
    %1059 = vmatprep.subr.mxu0 0.0
    %1060 = vmatpush1.msra.mxu0 0.0
    %1061 = vmatprep.subr.mxu0 0.0
    %1062 = vmatpush1.msra.mxu0 0.0
    %1063 = vmatprep.subr.mxu0 0.0
    %1064 = vmatpush1.msra.mxu0 0.0
    %1065 = vmatprep.subr.mxu0 0.0
    %1066 = vmatpush1.msra.mxu0 0.0
    %1067 = vmatprep.subr.mxu0 0.0
    %1068 = vmatpush1.msra.mxu0 0.0
    %1069 = vmatprep.subr.mxu0 0.0
    %1070 = vmatpush1.msra.mxu0 0.0
    %1071 = vmatprep.subr.mxu0 0.0
    %1072 = vmatpush1.msra.mxu0 0.0
    %1073 = vmatprep.subr.mxu0 0.0
    %1074 = vmatpush1.msra.mxu0 0.0
    %1075 = vmatprep.subr.mxu0 0.0
    %1076 = vmatpush1.msra.mxu0 0.0
    %1077 = vmatprep.subr.mxu0 0.0
    %1078 = vmatpush1.msra.mxu0 0.0
    %1079 = vmatprep.subr.mxu0 0.0
    %1080 = vmatpush1.msra.mxu0 0.0
    %1081 = vmatprep.subr.mxu0 0.0
    %1082 = vmatpush1.msra.mxu0 0.0
    %1083 = vmatprep.subr.mxu0 0.0
    %1084 = vmatpush1.msra.mxu0 0.0
    %1085 = vmatprep.subr.mxu0 0.0
    %1086 = vmatpush1.msra.mxu0 0.0
    %1087 = vmatprep.subr.mxu0 0.0
    %1088 = vmatpush1.msra.mxu0 0.0
    %1089 = vmatprep.subr.mxu0 0.0
    %1090 = vmatpush1.msra.mxu0 0.0
    %1091 = vmatprep.subr.mxu0 0.0
    %1092 = vmatpush1.msra.mxu0 0.0
    %1093 = vmatprep.subr.mxu0 0.0
    %1094 = vmatpush1.msra.mxu0 0.0
    %1095 = vmatprep.subr.mxu0 0.0
    %1096 = vmatpush1.msra.mxu0 0.0
    %1097 = vmatprep.subr.mxu0 0.0
    %1098 = vmatpush1.msra.mxu0 0.0
    %1099 = vmatprep.subr.mxu0 0.0
    %1100 = vmatpush1.msra.mxu0 0.0
    %1101 = vmatprep.subr.mxu0 0.0
    %1102 = vmatpush1.msra.mxu0 0.0
    %1103 = vmatprep.subr.mxu0 0.0
    %1104 = vmatpush1.msra.mxu0 0.0
    %1105 = vmatprep.subr.mxu0 0.0
    %1106 = vmatpush1.msra.mxu0 0.0
    %1107 = vmatprep.mubr.f32.mxu0 0.0
    %1108 = vmatmul.mubr.f32.gmra.mrb[0].mxu0 %v1038
    %v1109 = vpop.f32.mrb[0].mxu0
    %v1110 = vadd.f32 0.0, %v1109
    %v1111 = vpop.f32.mrb[0].mxu0
    %1112 = vdwg.mxu0
    %v1113 = vrcp.pop %v1033
    %v1114 = vmul.f32 %v1110, %v1113
    %s1115 = scalar_lea.vmem %s1, 1024
    %v1116 = vld [vmem:[%s1115] sm:$0xff]
    %v1117 = vld [vmem:[%s1115 + $0x8] sm:$0xff]
    %v1118 = vld [vmem:[%s1115 + $0x10] sm:$0xff]
    %v1119 = vld [vmem:[%s1115 + $0x18] sm:$0xff]
    %v1120 = vld [vmem:[%s1115 + $0x20] sm:$0xff]
    %v1121 = vld [vmem:[%s1115 + $0x28] sm:$0xff]
    %v1122 = vld [vmem:[%s1115 + $0x30] sm:$0xff]
    %v1123 = vld [vmem:[%s1115 + $0x38] sm:$0xff]
    %v1124 = vld [vmem:[%s1115 + $0x40] sm:$0xff]
    %v1125 = vld [vmem:[%s1115 + $0x48] sm:$0xff]
    %v1126 = vld [vmem:[%s1115 + $0x50] sm:$0xff]
    %v1127 = vld [vmem:[%s1115 + $0x58] sm:$0xff]
    %v1128 = vld [vmem:[%s1115 + $0x60] sm:$0xff]
    %v1129 = vld [vmem:[%s1115 + $0x68] sm:$0xff]
    %v1130 = vld [vmem:[%s1115 + $0x70] sm:$0xff]
    %v1131 = vld [vmem:[%s1115 + $0x78] sm:$0xff]
    %v1132 = vld [vmem:[%s1115 + $0x80] sm:$0xff]
    %v1133 = vld [vmem:[%s1115 + $0x88] sm:$0xff]
    %v1134 = vld [vmem:[%s1115 + $0x90] sm:$0xff]
    %v1135 = vld [vmem:[%s1115 + $0x98] sm:$0xff]
    %v1136 = vld [vmem:[%s1115 + $0xa0] sm:$0xff]
    %v1137 = vld [vmem:[%s1115 + $0xa8] sm:$0xff]
    %v1138 = vld [vmem:[%s1115 + $0xb0] sm:$0xff]
    %v1139 = vld [vmem:[%s1115 + $0xb8] sm:$0xff]
    %v1140 = vld [vmem:[%s1115 + $0xc0] sm:$0xff]
    %v1141 = vld [vmem:[%s1115 + $0xc8] sm:$0xff]
    %v1142 = vld [vmem:[%s1115 + $0xd0] sm:$0xff]
    %v1143 = vld [vmem:[%s1115 + $0xd8] sm:$0xff]
    %v1144 = vld [vmem:[%s1115 + $0xe0] sm:$0xff]
    %v1145 = vld [vmem:[%s1115 + $0xe8] sm:$0xff]
    %v1146 = vld [vmem:[%s1115 + $0xf0] sm:$0xff]
    %v1147 = vld [vmem:[%s1115 + $0xf8] sm:$0xff]
    %1148 = vmatprep.subr.mxu0 0.0
    %1149 = vmatpush1.msra.mxu0 %v1116
    %1150 = vmatprep.subr.mxu0 0.0
    %1151 = vmatpush1.msra.mxu0 %v1117
    %1152 = vmatprep.subr.mxu0 0.0
    %1153 = vmatpush1.msra.mxu0 %v1118
    %1154 = vmatprep.subr.mxu0 0.0
    %1155 = vmatpush1.msra.mxu0 %v1119
    %1156 = vmatprep.subr.mxu0 0.0
    %1157 = vmatpush1.msra.mxu0 %v1120
    %1158 = vmatprep.subr.mxu0 0.0
    %1159 = vmatpush1.msra.mxu0 %v1121
    %1160 = vmatprep.subr.mxu0 0.0
    %1161 = vmatpush1.msra.mxu0 %v1122
    %1162 = vmatprep.subr.mxu0 0.0
    %1163 = vmatpush1.msra.mxu0 %v1123
    %1164 = vmatprep.subr.mxu0 0.0
    %1165 = vmatpush1.msra.mxu0 %v1124
    %1166 = vmatprep.subr.mxu0 0.0
    %1167 = vmatpush1.msra.mxu0 %v1125
    %1168 = vmatprep.subr.mxu0 0.0
    %1169 = vmatpush1.msra.mxu0 %v1126
    %1170 = vmatprep.subr.mxu0 0.0
    %1171 = vmatpush1.msra.mxu0 %v1127
    %1172 = vmatprep.subr.mxu0 0.0
    %1173 = vmatpush1.msra.mxu0 %v1128
    %1174 = vmatprep.subr.mxu0 0.0
    %1175 = vmatpush1.msra.mxu0 %v1129
    %1176 = vmatprep.subr.mxu0 0.0
    %1177 = vmatpush1.msra.mxu0 %v1130
    %1178 = vmatprep.subr.mxu0 0.0
    %1179 = vmatpush1.msra.mxu0 %v1131
    %1180 = vmatprep.subr.mxu0 0.0
    %1181 = vmatpush1.msra.mxu0 %v1132
    %1182 = vmatprep.subr.mxu0 0.0
    %1183 = vmatpush1.msra.mxu0 %v1133
    %1184 = vmatprep.subr.mxu0 0.0
    %1185 = vmatpush1.msra.mxu0 %v1134
    %1186 = vmatprep.subr.mxu0 0.0
    %1187 = vmatpush1.msra.mxu0 %v1135
    %1188 = vmatprep.subr.mxu0 0.0
    %1189 = vmatpush1.msra.mxu0 %v1136
    %1190 = vmatprep.subr.mxu0 0.0
    %1191 = vmatpush1.msra.mxu0 %v1137
    %1192 = vmatprep.subr.mxu0 0.0
    %1193 = vmatpush1.msra.mxu0 %v1138
    %1194 = vmatprep.subr.mxu0 0.0
    %1195 = vmatpush1.msra.mxu0 %v1139
    %1196 = vmatprep.subr.mxu0 0.0
    %1197 = vmatpush1.msra.mxu0 %v1140
    %1198 = vmatprep.subr.mxu0 0.0
    %1199 = vmatpush1.msra.mxu0 %v1141
    %1200 = vmatprep.subr.mxu0 0.0
    %1201 = vmatpush1.msra.mxu0 %v1142
    %1202 = vmatprep.subr.mxu0 0.0
    %1203 = vmatpush1.msra.mxu0 %v1143
    %1204 = vmatprep.subr.mxu0 0.0
    %1205 = vmatpush1.msra.mxu0 %v1144
    %1206 = vmatprep.subr.mxu0 0.0
    %1207 = vmatpush1.msra.mxu0 %v1145
    %1208 = vmatprep.subr.mxu0 0.0
    %1209 = vmatpush1.msra.mxu0 %v1146
    %1210 = vmatprep.subr.mxu0 0.0
    %1211 = vmatpush1.msra.mxu0 %v1147
    %1212 = vmatprep.mubr.f32.mxu0 %v59
    %1213 = vmatmul.mubr.f32.gmra.mrb[0].mxu0 %v58
    %v1214 = vpop.f32.mrb[0].mxu0
    %v1215 = vadd.f32 0.0, %v1214
    %v1216 = vpop.f32.mrb[0].mxu0
    %1217 = vdwg.mxu0
    %s1218 = scalar_lea.vmem %s2, 128
    %v1219 = vld [vmem:[%s1218] sm:$0xff]
    %v1220 = vld [vmem:[%s1218 + $0x8] sm:$0xff]
    %v1221 = vld [vmem:[%s1218 + $0x10] sm:$0xff]
    %v1222 = vld [vmem:[%s1218 + $0x18] sm:$0xff]
    %v1224 = vsel %vm136, %v1215, 0
    %1226 = vmatprep.subr.mxu0 0.0
    %1227 = vmatpush1.msra.mxu0 %v1219
    %1228 = vmatprep.subr.mxu0 0.0
    %1229 = vmatpush1.msra.mxu0 %v1220
    %1230 = vmatprep.subr.mxu0 0.0
    %1231 = vmatpush1.msra.mxu0 %v1221
    %1232 = vmatprep.subr.mxu0 0.0
    %1233 = vmatpush1.msra.mxu0 %v1222
    %1234 = vmatprep.subr.mxu0 0.0
    %1235 = vmatpush1.msra.mxu0 0.0
    %1236 = vmatprep.subr.mxu0 0.0
    %1237 = vmatpush1.msra.mxu0 0.0
    %1238 = vmatprep.subr.mxu0 0.0
    %1239 = vmatpush1.msra.mxu0 0.0
    %1240 = vmatprep.subr.mxu0 0.0
    %1241 = vmatpush1.msra.mxu0 0.0
    %1242 = vmatprep.subr.mxu0 0.0
    %1243 = vmatpush1.msra.mxu0 0.0
    %1244 = vmatprep.subr.mxu0 0.0
    %1245 = vmatpush1.msra.mxu0 0.0
    %1246 = vmatprep.subr.mxu0 0.0
    %1247 = vmatpush1.msra.mxu0 0.0
    %1248 = vmatprep.subr.mxu0 0.0
    %1249 = vmatpush1.msra.mxu0 0.0
    %1250 = vmatprep.subr.mxu0 0.0
    %1251 = vmatpush1.msra.mxu0 0.0
    %1252 = vmatprep.subr.mxu0 0.0
    %1253 = vmatpush1.msra.mxu0 0.0
    %1254 = vmatprep.subr.mxu0 0.0
    %1255 = vmatpush1.msra.mxu0 0.0
    %1256 = vmatprep.subr.mxu0 0.0
    %1257 = vmatpush1.msra.mxu0 0.0
    %1258 = vmatprep.subr.mxu0 0.0
    %1259 = vmatpush1.msra.mxu0 0.0
    %1260 = vmatprep.subr.mxu0 0.0
    %1261 = vmatpush1.msra.mxu0 0.0
    %1262 = vmatprep.subr.mxu0 0.0
    %1263 = vmatpush1.msra.mxu0 0.0
    %1264 = vmatprep.subr.mxu0 0.0
    %1265 = vmatpush1.msra.mxu0 0.0
    %1266 = vmatprep.subr.mxu0 0.0
    %1267 = vmatpush1.msra.mxu0 0.0
    %1268 = vmatprep.subr.mxu0 0.0
    %1269 = vmatpush1.msra.mxu0 0.0
    %1270 = vmatprep.subr.mxu0 0.0
    %1271 = vmatpush1.msra.mxu0 0.0
    %1272 = vmatprep.subr.mxu0 0.0
    %1273 = vmatpush1.msra.mxu0 0.0
    %1274 = vmatprep.subr.mxu0 0.0
    %1275 = vmatpush1.msra.mxu0 0.0
    %1276 = vmatprep.subr.mxu0 0.0
    %1277 = vmatpush1.msra.mxu0 0.0
    %1278 = vmatprep.subr.mxu0 0.0
    %1279 = vmatpush1.msra.mxu0 0.0
    %1280 = vmatprep.subr.mxu0 0.0
    %1281 = vmatpush1.msra.mxu0 0.0
    %1282 = vmatprep.subr.mxu0 0.0
    %1283 = vmatpush1.msra.mxu0 0.0
    %1284 = vmatprep.subr.mxu0 0.0
    %1285 = vmatpush1.msra.mxu0 0.0
    %1286 = vmatprep.subr.mxu0 0.0
    %1287 = vmatpush1.msra.mxu0 0.0
    %1288 = vmatprep.subr.mxu0 0.0
    %1289 = vmatpush1.msra.mxu0 0.0
    %1290 = vmatprep.mubr.f32.mxu0 0.0
    %1291 = vmatmul.mubr.f32.gmra.mrb[0].mxu0 %v1224
    %v1292 = vpop.f32.mrb[0].mxu0
    %v1293 = vadd.f32 0.0, %v1292
    %v1294 = vpop.f32.mrb[0].mxu0
    %1295 = vdwg.mxu0
    %v1296 = vsel %vm210, %v1293, -inf
    %1297 = vmax.xlane.f32.xlu0 %v1296
    %v1298 = vpop.xlane.xlu0 %1297
    %v1299 = vsub.f32 %v1293, %v1298
    %v1300 = vmul.f32 %v1299, 1.442695
    %v1301 = vpow.pop %v1300
    %v1302 = vsel %vm210, %v1301, 0.0
    %1303 = vadd.xlane.f32.xlu0 %v1302
    %v1304 = vpop.xlane.xlu0 %1303
    %s1305 = scalar_lea.vmem %s3, 64
    %v1306 = vld [vmem:[%s1305] sm:$0xff]
    %v1307 = vld [vmem:[%s1305 + $0x8] sm:$0x3]
    %v1309 = vsel %vm222, %v1301, 0
    %v1312 = vsel %vm226, %v1307, 0
    %1314 = vmatprep.subr.mxu0 0.0
    %1315 = vmatpush1.msra.mxu0 %v1306
    %1316 = vmatprep.subr.mxu0 0.0
    %1317 = vmatpush1.msra.mxu0 %v1312
    %1318 = vmatprep.subr.mxu0 0.0
    %1319 = vmatpush1.msra.mxu0 0.0
    %1320 = vmatprep.subr.mxu0 0.0
    %1321 = vmatpush1.msra.mxu0 0.0
    %1322 = vmatprep.subr.mxu0 0.0
    %1323 = vmatpush1.msra.mxu0 0.0
    %1324 = vmatprep.subr.mxu0 0.0
    %1325 = vmatpush1.msra.mxu0 0.0
    %1326 = vmatprep.subr.mxu0 0.0
    %1327 = vmatpush1.msra.mxu0 0.0
    %1328 = vmatprep.subr.mxu0 0.0
    %1329 = vmatpush1.msra.mxu0 0.0
    %1330 = vmatprep.subr.mxu0 0.0
    %1331 = vmatpush1.msra.mxu0 0.0
    %1332 = vmatprep.subr.mxu0 0.0
    %1333 = vmatpush1.msra.mxu0 0.0
    %1334 = vmatprep.subr.mxu0 0.0
    %1335 = vmatpush1.msra.mxu0 0.0
    %1336 = vmatprep.subr.mxu0 0.0
    %1337 = vmatpush1.msra.mxu0 0.0
    %1338 = vmatprep.subr.mxu0 0.0
    %1339 = vmatpush1.msra.mxu0 0.0
    %1340 = vmatprep.subr.mxu0 0.0
    %1341 = vmatpush1.msra.mxu0 0.0
    %1342 = vmatprep.subr.mxu0 0.0
    %1343 = vmatpush1.msra.mxu0 0.0
    %1344 = vmatprep.subr.mxu0 0.0
    %1345 = vmatpush1.msra.mxu0 0.0
    %1346 = vmatprep.subr.mxu0 0.0
    %1347 = vmatpush1.msra.mxu0 0.0
    %1348 = vmatprep.subr.mxu0 0.0
    %1349 = vmatpush1.msra.mxu0 0.0
    %1350 = vmatprep.subr.mxu0 0.0
    %1351 = vmatpush1.msra.mxu0 0.0
    %1352 = vmatprep.subr.mxu0 0.0
    %1353 = vmatpush1.msra.mxu0 0.0
    %1354 = vmatprep.subr.mxu0 0.0
    %1355 = vmatpush1.msra.mxu0 0.0
    %1356 = vmatprep.subr.mxu0 0.0
    %1357 = vmatpush1.msra.mxu0 0.0
    %1358 = vmatprep.subr.mxu0 0.0
    %1359 = vmatpush1.msra.mxu0 0.0
    %1360 = vmatprep.subr.mxu0 0.0
    %1361 = vmatpush1.msra.mxu0 0.0
    %1362 = vmatprep.subr.mxu0 0.0
    %1363 = vmatpush1.msra.mxu0 0.0
    %1364 = vmatprep.subr.mxu0 0.0
    %1365 = vmatpush1.msra.mxu0 0.0
    %1366 = vmatprep.subr.mxu0 0.0
    %1367 = vmatpush1.msra.mxu0 0.0
    %1368 = vmatprep.subr.mxu0 0.0
    %1369 = vmatpush1.msra.mxu0 0.0
    %1370 = vmatprep.subr.mxu0 0.0
    %1371 = vmatpush1.msra.mxu0 0.0
    %1372 = vmatprep.subr.mxu0 0.0
    %1373 = vmatpush1.msra.mxu0 0.0
    %1374 = vmatprep.subr.mxu0 0.0
    %1375 = vmatpush1.msra.mxu0 0.0
    %1376 = vmatprep.subr.mxu0 0.0
    %1377 = vmatpush1.msra.mxu0 0.0
    %1378 = vmatprep.mubr.f32.mxu0 0.0
    %1379 = vmatmul.mubr.f32.gmra.mrb[0].mxu0 %v1309
    %v1380 = vpop.f32.mrb[0].mxu0
    %v1381 = vadd.f32 0.0, %v1380
    %v1382 = vpop.f32.mrb[0].mxu0
    %1383 = vdwg.mxu0
    %v1384 = vrcp.pop %v1304
    %v1385 = vmul.f32 %v1381, %v1384
    %s1386 = scalar_lea.vmem %s1, 1280
    %v1387 = vld [vmem:[%s1386] sm:$0xff]
    %v1388 = vld [vmem:[%s1386 + $0x8] sm:$0xff]
    %v1389 = vld [vmem:[%s1386 + $0x10] sm:$0xff]
    %v1390 = vld [vmem:[%s1386 + $0x18] sm:$0xff]
    %v1391 = vld [vmem:[%s1386 + $0x20] sm:$0xff]
    %v1392 = vld [vmem:[%s1386 + $0x28] sm:$0xff]
    %v1393 = vld [vmem:[%s1386 + $0x30] sm:$0xff]
    %v1394 = vld [vmem:[%s1386 + $0x38] sm:$0xff]
    %v1395 = vld [vmem:[%s1386 + $0x40] sm:$0xff]
    %v1396 = vld [vmem:[%s1386 + $0x48] sm:$0xff]
    %v1397 = vld [vmem:[%s1386 + $0x50] sm:$0xff]
    %v1398 = vld [vmem:[%s1386 + $0x58] sm:$0xff]
    %v1399 = vld [vmem:[%s1386 + $0x60] sm:$0xff]
    %v1400 = vld [vmem:[%s1386 + $0x68] sm:$0xff]
    %v1401 = vld [vmem:[%s1386 + $0x70] sm:$0xff]
    %v1402 = vld [vmem:[%s1386 + $0x78] sm:$0xff]
    %v1403 = vld [vmem:[%s1386 + $0x80] sm:$0xff]
    %v1404 = vld [vmem:[%s1386 + $0x88] sm:$0xff]
    %v1405 = vld [vmem:[%s1386 + $0x90] sm:$0xff]
    %v1406 = vld [vmem:[%s1386 + $0x98] sm:$0xff]
    %v1407 = vld [vmem:[%s1386 + $0xa0] sm:$0xff]
    %v1408 = vld [vmem:[%s1386 + $0xa8] sm:$0xff]
    %v1409 = vld [vmem:[%s1386 + $0xb0] sm:$0xff]
    %v1410 = vld [vmem:[%s1386 + $0xb8] sm:$0xff]
    %v1411 = vld [vmem:[%s1386 + $0xc0] sm:$0xff]
    %v1412 = vld [vmem:[%s1386 + $0xc8] sm:$0xff]
    %v1413 = vld [vmem:[%s1386 + $0xd0] sm:$0xff]
    %v1414 = vld [vmem:[%s1386 + $0xd8] sm:$0xff]
    %v1415 = vld [vmem:[%s1386 + $0xe0] sm:$0xff]
    %v1416 = vld [vmem:[%s1386 + $0xe8] sm:$0xff]
    %v1417 = vld [vmem:[%s1386 + $0xf0] sm:$0xff]
    %v1418 = vld [vmem:[%s1386 + $0xf8] sm:$0xff]
    %1419 = vmatprep.subr.mxu0 0.0
    %1420 = vmatpush1.msra.mxu0 %v1387
    %1421 = vmatprep.subr.mxu0 0.0
    %1422 = vmatpush1.msra.mxu0 %v1388
    %1423 = vmatprep.subr.mxu0 0.0
    %1424 = vmatpush1.msra.mxu0 %v1389
    %1425 = vmatprep.subr.mxu0 0.0
    %1426 = vmatpush1.msra.mxu0 %v1390
    %1427 = vmatprep.subr.mxu0 0.0
    %1428 = vmatpush1.msra.mxu0 %v1391
    %1429 = vmatprep.subr.mxu0 0.0
    %1430 = vmatpush1.msra.mxu0 %v1392
    %1431 = vmatprep.subr.mxu0 0.0
    %1432 = vmatpush1.msra.mxu0 %v1393
    %1433 = vmatprep.subr.mxu0 0.0
    %1434 = vmatpush1.msra.mxu0 %v1394
    %1435 = vmatprep.subr.mxu0 0.0
    %1436 = vmatpush1.msra.mxu0 %v1395
    %1437 = vmatprep.subr.mxu0 0.0
    %1438 = vmatpush1.msra.mxu0 %v1396
    %1439 = vmatprep.subr.mxu0 0.0
    %1440 = vmatpush1.msra.mxu0 %v1397
    %1441 = vmatprep.subr.mxu0 0.0
    %1442 = vmatpush1.msra.mxu0 %v1398
    %1443 = vmatprep.subr.mxu0 0.0
    %1444 = vmatpush1.msra.mxu0 %v1399
    %1445 = vmatprep.subr.mxu0 0.0
    %1446 = vmatpush1.msra.mxu0 %v1400
    %1447 = vmatprep.subr.mxu0 0.0
    %1448 = vmatpush1.msra.mxu0 %v1401
    %1449 = vmatprep.subr.mxu0 0.0
    %1450 = vmatpush1.msra.mxu0 %v1402
    %1451 = vmatprep.subr.mxu0 0.0
    %1452 = vmatpush1.msra.mxu0 %v1403
    %1453 = vmatprep.subr.mxu0 0.0
    %1454 = vmatpush1.msra.mxu0 %v1404
    %1455 = vmatprep.subr.mxu0 0.0
    %1456 = vmatpush1.msra.mxu0 %v1405
    %1457 = vmatprep.subr.mxu0 0.0
    %1458 = vmatpush1.msra.mxu0 %v1406
    %1459 = vmatprep.subr.mxu0 0.0
    %1460 = vmatpush1.msra.mxu0 %v1407
    %1461 = vmatprep.subr.mxu0 0.0
    %1462 = vmatpush1.msra.mxu0 %v1408
    %1463 = vmatprep.subr.mxu0 0.0
    %1464 = vmatpush1.msra.mxu0 %v1409
    %1465 = vmatprep.subr.mxu0 0.0
    %1466 = vmatpush1.msra.mxu0 %v1410
    %1467 = vmatprep.subr.mxu0 0.0
    %1468 = vmatpush1.msra.mxu0 %v1411
    %1469 = vmatprep.subr.mxu0 0.0
    %1470 = vmatpush1.msra.mxu0 %v1412
    %1471 = vmatprep.subr.mxu0 0.0
    %1472 = vmatpush1.msra.mxu0 %v1413
    %1473 = vmatprep.subr.mxu0 0.0
    %1474 = vmatpush1.msra.mxu0 %v1414
    %1475 = vmatprep.subr.mxu0 0.0
    %1476 = vmatpush1.msra.mxu0 %v1415
    %1477 = vmatprep.subr.mxu0 0.0
    %1478 = vmatpush1.msra.mxu0 %v1416
    %1479 = vmatprep.subr.mxu0 0.0
    %1480 = vmatpush1.msra.mxu0 %v1417
    %1481 = vmatprep.subr.mxu0 0.0
    %1482 = vmatpush1.msra.mxu0 %v1418
    %1483 = vmatprep.mubr.f32.mxu0 %v59
    %1484 = vmatmul.mubr.f32.gmra.mrb[0].mxu0 %v58
    %v1485 = vpop.f32.mrb[0].mxu0
    %v1486 = vadd.f32 0.0, %v1485
    %v1487 = vpop.f32.mrb[0].mxu0
    %1488 = vdwg.mxu0
    %s1489 = scalar_lea.vmem %s2, 160
    %v1490 = vld [vmem:[%s1489] sm:$0xff]
    %v1491 = vld [vmem:[%s1489 + $0x8] sm:$0xff]
    %v1492 = vld [vmem:[%s1489 + $0x10] sm:$0xff]
    %v1493 = vld [vmem:[%s1489 + $0x18] sm:$0xff]
    %v1495 = vsel %vm136, %v1486, 0
    %1497 = vmatprep.subr.mxu0 0.0
    %1498 = vmatpush1.msra.mxu0 %v1490
    %1499 = vmatprep.subr.mxu0 0.0
    %1500 = vmatpush1.msra.mxu0 %v1491
    %1501 = vmatprep.subr.mxu0 0.0
    %1502 = vmatpush1.msra.mxu0 %v1492
    %1503 = vmatprep.subr.mxu0 0.0
    %1504 = vmatpush1.msra.mxu0 %v1493
    %1505 = vmatprep.subr.mxu0 0.0
    %1506 = vmatpush1.msra.mxu0 0.0
    %1507 = vmatprep.subr.mxu0 0.0
    %1508 = vmatpush1.msra.mxu0 0.0
    %1509 = vmatprep.subr.mxu0 0.0
    %1510 = vmatpush1.msra.mxu0 0.0
    %1511 = vmatprep.subr.mxu0 0.0
    %1512 = vmatpush1.msra.mxu0 0.0
    %1513 = vmatprep.subr.mxu0 0.0
    %1514 = vmatpush1.msra.mxu0 0.0
    %1515 = vmatprep.subr.mxu0 0.0
    %1516 = vmatpush1.msra.mxu0 0.0
    %1517 = vmatprep.subr.mxu0 0.0
    %1518 = vmatpush1.msra.mxu0 0.0
    %1519 = vmatprep.subr.mxu0 0.0
    %1520 = vmatpush1.msra.mxu0 0.0
    %1521 = vmatprep.subr.mxu0 0.0
    %1522 = vmatpush1.msra.mxu0 0.0
    %1523 = vmatprep.subr.mxu0 0.0
    %1524 = vmatpush1.msra.mxu0 0.0
    %1525 = vmatprep.subr.mxu0 0.0
    %1526 = vmatpush1.msra.mxu0 0.0
    %1527 = vmatprep.subr.mxu0 0.0
    %1528 = vmatpush1.msra.mxu0 0.0
    %1529 = vmatprep.subr.mxu0 0.0
    %1530 = vmatpush1.msra.mxu0 0.0
    %1531 = vmatprep.subr.mxu0 0.0
    %1532 = vmatpush1.msra.mxu0 0.0
    %1533 = vmatprep.subr.mxu0 0.0
    %1534 = vmatpush1.msra.mxu0 0.0
    %1535 = vmatprep.subr.mxu0 0.0
    %1536 = vmatpush1.msra.mxu0 0.0
    %1537 = vmatprep.subr.mxu0 0.0
    %1538 = vmatpush1.msra.mxu0 0.0
    %1539 = vmatprep.subr.mxu0 0.0
    %1540 = vmatpush1.msra.mxu0 0.0
    %1541 = vmatprep.subr.mxu0 0.0
    %1542 = vmatpush1.msra.mxu0 0.0
    %1543 = vmatprep.subr.mxu0 0.0
    %1544 = vmatpush1.msra.mxu0 0.0
    %1545 = vmatprep.subr.mxu0 0.0
    %1546 = vmatpush1.msra.mxu0 0.0
    %1547 = vmatprep.subr.mxu0 0.0
    %1548 = vmatpush1.msra.mxu0 0.0
    %1549 = vmatprep.subr.mxu0 0.0
    %1550 = vmatpush1.msra.mxu0 0.0
    %1551 = vmatprep.subr.mxu0 0.0
    %1552 = vmatpush1.msra.mxu0 0.0
    %1553 = vmatprep.subr.mxu0 0.0
    %1554 = vmatpush1.msra.mxu0 0.0
    %1555 = vmatprep.subr.mxu0 0.0
    %1556 = vmatpush1.msra.mxu0 0.0
    %1557 = vmatprep.subr.mxu0 0.0
    %1558 = vmatpush1.msra.mxu0 0.0
    %1559 = vmatprep.subr.mxu0 0.0
    %1560 = vmatpush1.msra.mxu0 0.0
    %1561 = vmatprep.mubr.f32.mxu0 0.0
    %1562 = vmatmul.mubr.f32.gmra.mrb[0].mxu0 %v1495
    %v1563 = vpop.f32.mrb[0].mxu0
    %v1564 = vadd.f32 0.0, %v1563
    %v1565 = vpop.f32.mrb[0].mxu0
    %1566 = vdwg.mxu0
    %v1567 = vsel %vm210, %v1564, -inf
    %1568 = vmax.xlane.f32.xlu0 %v1567
    %v1569 = vpop.xlane.xlu0 %1568
    %v1570 = vsub.f32 %v1564, %v1569
    %v1571 = vmul.f32 %v1570, 1.442695
    %v1572 = vpow.pop %v1571
    %v1573 = vsel %vm210, %v1572, 0.0
    %1574 = vadd.xlane.f32.xlu0 %v1573
    %v1575 = vpop.xlane.xlu0 %1574
    %s1576 = scalar_lea.vmem %s3, 80
    %v1577 = vld [vmem:[%s1576] sm:$0xff]
    %v1578 = vld [vmem:[%s1576 + $0x8] sm:$0x3]
    %v1580 = vsel %vm222, %v1572, 0
    %v1583 = vsel %vm226, %v1578, 0
    %1585 = vmatprep.subr.mxu0 0.0
    %1586 = vmatpush1.msra.mxu0 %v1577
    %1587 = vmatprep.subr.mxu0 0.0
    %1588 = vmatpush1.msra.mxu0 %v1583
    %1589 = vmatprep.subr.mxu0 0.0
    %1590 = vmatpush1.msra.mxu0 0.0
    %1591 = vmatprep.subr.mxu0 0.0
    %1592 = vmatpush1.msra.mxu0 0.0
    %1593 = vmatprep.subr.mxu0 0.0
    %1594 = vmatpush1.msra.mxu0 0.0
    %1595 = vmatprep.subr.mxu0 0.0
    %1596 = vmatpush1.msra.mxu0 0.0
    %1597 = vmatprep.subr.mxu0 0.0
    %1598 = vmatpush1.msra.mxu0 0.0
    %1599 = vmatprep.subr.mxu0 0.0
    %1600 = vmatpush1.msra.mxu0 0.0
    %1601 = vmatprep.subr.mxu0 0.0
    %1602 = vmatpush1.msra.mxu0 0.0
    %1603 = vmatprep.subr.mxu0 0.0
    %1604 = vmatpush1.msra.mxu0 0.0
    %1605 = vmatprep.subr.mxu0 0.0
    %1606 = vmatpush1.msra.mxu0 0.0
    %1607 = vmatprep.subr.mxu0 0.0
    %1608 = vmatpush1.msra.mxu0 0.0
    %1609 = vmatprep.subr.mxu0 0.0
    %1610 = vmatpush1.msra.mxu0 0.0
    %1611 = vmatprep.subr.mxu0 0.0
    %1612 = vmatpush1.msra.mxu0 0.0
    %1613 = vmatprep.subr.mxu0 0.0
    %1614 = vmatpush1.msra.mxu0 0.0
    %1615 = vmatprep.subr.mxu0 0.0
    %1616 = vmatpush1.msra.mxu0 0.0
    %1617 = vmatprep.subr.mxu0 0.0
    %1618 = vmatpush1.msra.mxu0 0.0
    %1619 = vmatprep.subr.mxu0 0.0
    %1620 = vmatpush1.msra.mxu0 0.0
    %1621 = vmatprep.subr.mxu0 0.0
    %1622 = vmatpush1.msra.mxu0 0.0
    %1623 = vmatprep.subr.mxu0 0.0
    %1624 = vmatpush1.msra.mxu0 0.0
    %1625 = vmatprep.subr.mxu0 0.0
    %1626 = vmatpush1.msra.mxu0 0.0
    %1627 = vmatprep.subr.mxu0 0.0
    %1628 = vmatpush1.msra.mxu0 0.0
    %1629 = vmatprep.subr.mxu0 0.0
    %1630 = vmatpush1.msra.mxu0 0.0
    %1631 = vmatprep.subr.mxu0 0.0
    %1632 = vmatpush1.msra.mxu0 0.0
    %1633 = vmatprep.subr.mxu0 0.0
    %1634 = vmatpush1.msra.mxu0 0.0
    %1635 = vmatprep.subr.mxu0 0.0
    %1636 = vmatpush1.msra.mxu0 0.0
    %1637 = vmatprep.subr.mxu0 0.0
    %1638 = vmatpush1.msra.mxu0 0.0
    %1639 = vmatprep.subr.mxu0 0.0
    %1640 = vmatpush1.msra.mxu0 0.0
    %1641 = vmatprep.subr.mxu0 0.0
    %1642 = vmatpush1.msra.mxu0 0.0
    %1643 = vmatprep.subr.mxu0 0.0
    %1644 = vmatpush1.msra.mxu0 0.0
    %1645 = vmatprep.subr.mxu0 0.0
    %1646 = vmatpush1.msra.mxu0 0.0
    %1647 = vmatprep.subr.mxu0 0.0
    %1648 = vmatpush1.msra.mxu0 0.0
    %1649 = vmatprep.mubr.f32.mxu0 0.0
    %1650 = vmatmul.mubr.f32.gmra.mrb[0].mxu0 %v1580
    %v1651 = vpop.f32.mrb[0].mxu0
    %v1652 = vadd.f32 0.0, %v1651
    %v1653 = vpop.f32.mrb[0].mxu0
    %1654 = vdwg.mxu0
    %v1655 = vrcp.pop %v1575
    %v1656 = vmul.f32 %v1652, %v1655
    %s1657 = scalar_lea.vmem %s1, 1536
    %v1658 = vld [vmem:[%s1657] sm:$0xff]
    %v1659 = vld [vmem:[%s1657 + $0x8] sm:$0xff]
    %v1660 = vld [vmem:[%s1657 + $0x10] sm:$0xff]
    %v1661 = vld [vmem:[%s1657 + $0x18] sm:$0xff]
    %v1662 = vld [vmem:[%s1657 + $0x20] sm:$0xff]
    %v1663 = vld [vmem:[%s1657 + $0x28] sm:$0xff]
    %v1664 = vld [vmem:[%s1657 + $0x30] sm:$0xff]
    %v1665 = vld [vmem:[%s1657 + $0x38] sm:$0xff]
    %v1666 = vld [vmem:[%s1657 + $0x40] sm:$0xff]
    %v1667 = vld [vmem:[%s1657 + $0x48] sm:$0xff]
    %v1668 = vld [vmem:[%s1657 + $0x50] sm:$0xff]
    %v1669 = vld [vmem:[%s1657 + $0x58] sm:$0xff]
    %v1670 = vld [vmem:[%s1657 + $0x60] sm:$0xff]
    %v1671 = vld [vmem:[%s1657 + $0x68] sm:$0xff]
    %v1672 = vld [vmem:[%s1657 + $0x70] sm:$0xff]
    %v1673 = vld [vmem:[%s1657 + $0x78] sm:$0xff]
    %v1674 = vld [vmem:[%s1657 + $0x80] sm:$0xff]
    %v1675 = vld [vmem:[%s1657 + $0x88] sm:$0xff]
    %v1676 = vld [vmem:[%s1657 + $0x90] sm:$0xff]
    %v1677 = vld [vmem:[%s1657 + $0x98] sm:$0xff]
    %v1678 = vld [vmem:[%s1657 + $0xa0] sm:$0xff]
    %v1679 = vld [vmem:[%s1657 + $0xa8] sm:$0xff]
    %v1680 = vld [vmem:[%s1657 + $0xb0] sm:$0xff]
    %v1681 = vld [vmem:[%s1657 + $0xb8] sm:$0xff]
    %v1682 = vld [vmem:[%s1657 + $0xc0] sm:$0xff]
    %v1683 = vld [vmem:[%s1657 + $0xc8] sm:$0xff]
    %v1684 = vld [vmem:[%s1657 + $0xd0] sm:$0xff]
    %v1685 = vld [vmem:[%s1657 + $0xd8] sm:$0xff]
    %v1686 = vld [vmem:[%s1657 + $0xe0] sm:$0xff]
    %v1687 = vld [vmem:[%s1657 + $0xe8] sm:$0xff]
    %v1688 = vld [vmem:[%s1657 + $0xf0] sm:$0xff]
    %v1689 = vld [vmem:[%s1657 + $0xf8] sm:$0xff]
    %1690 = vmatprep.subr.mxu0 0.0
    %1691 = vmatpush1.msra.mxu0 %v1658
    %1692 = vmatprep.subr.mxu0 0.0
    %1693 = vmatpush1.msra.mxu0 %v1659
    %1694 = vmatprep.subr.mxu0 0.0
    %1695 = vmatpush1.msra.mxu0 %v1660
    %1696 = vmatprep.subr.mxu0 0.0
    %1697 = vmatpush1.msra.mxu0 %v1661
    %1698 = vmatprep.subr.mxu0 0.0
    %1699 = vmatpush1.msra.mxu0 %v1662
    %1700 = vmatprep.subr.mxu0 0.0
    %1701 = vmatpush1.msra.mxu0 %v1663
    %1702 = vmatprep.subr.mxu0 0.0
    %1703 = vmatpush1.msra.mxu0 %v1664
    %1704 = vmatprep.subr.mxu0 0.0
    %1705 = vmatpush1.msra.mxu0 %v1665
    %1706 = vmatprep.subr.mxu0 0.0
    %1707 = vmatpush1.msra.mxu0 %v1666
    %1708 = vmatprep.subr.mxu0 0.0
    %1709 = vmatpush1.msra.mxu0 %v1667
    %1710 = vmatprep.subr.mxu0 0.0
    %1711 = vmatpush1.msra.mxu0 %v1668
    %1712 = vmatprep.subr.mxu0 0.0
    %1713 = vmatpush1.msra.mxu0 %v1669
    %1714 = vmatprep.subr.mxu0 0.0
    %1715 = vmatpush1.msra.mxu0 %v1670
    %1716 = vmatprep.subr.mxu0 0.0
    %1717 = vmatpush1.msra.mxu0 %v1671
    %1718 = vmatprep.subr.mxu0 0.0
    %1719 = vmatpush1.msra.mxu0 %v1672
    %1720 = vmatprep.subr.mxu0 0.0
    %1721 = vmatpush1.msra.mxu0 %v1673
    %1722 = vmatprep.subr.mxu0 0.0
    %1723 = vmatpush1.msra.mxu0 %v1674
    %1724 = vmatprep.subr.mxu0 0.0
    %1725 = vmatpush1.msra.mxu0 %v1675
    %1726 = vmatprep.subr.mxu0 0.0
    %1727 = vmatpush1.msra.mxu0 %v1676
    %1728 = vmatprep.subr.mxu0 0.0
    %1729 = vmatpush1.msra.mxu0 %v1677
    %1730 = vmatprep.subr.mxu0 0.0
    %1731 = vmatpush1.msra.mxu0 %v1678
    %1732 = vmatprep.subr.mxu0 0.0
    %1733 = vmatpush1.msra.mxu0 %v1679
    %1734 = vmatprep.subr.mxu0 0.0
    %1735 = vmatpush1.msra.mxu0 %v1680
    %1736 = vmatprep.subr.mxu0 0.0
    %1737 = vmatpush1.msra.mxu0 %v1681
    %1738 = vmatprep.subr.mxu0 0.0
    %1739 = vmatpush1.msra.mxu0 %v1682
    %1740 = vmatprep.subr.mxu0 0.0
    %1741 = vmatpush1.msra.mxu0 %v1683
    %1742 = vmatprep.subr.mxu0 0.0
    %1743 = vmatpush1.msra.mxu0 %v1684
    %1744 = vmatprep.subr.mxu0 0.0
    %1745 = vmatpush1.msra.mxu0 %v1685
    %1746 = vmatprep.subr.mxu0 0.0
    %1747 = vmatpush1.msra.mxu0 %v1686
    %1748 = vmatprep.subr.mxu0 0.0
    %1749 = vmatpush1.msra.mxu0 %v1687
    %1750 = vmatprep.subr.mxu0 0.0
    %1751 = vmatpush1.msra.mxu0 %v1688
    %1752 = vmatprep.subr.mxu0 0.0
    %1753 = vmatpush1.msra.mxu0 %v1689
    %1754 = vmatprep.mubr.f32.mxu0 %v59
    %1755 = vmatmul.mubr.f32.gmra.mrb[0].mxu0 %v58
    %v1756 = vpop.f32.mrb[0].mxu0
    %v1757 = vadd.f32 0.0, %v1756
    %v1758 = vpop.f32.mrb[0].mxu0
    %1759 = vdwg.mxu0
    %s1760 = scalar_lea.vmem %s2, 192
    %v1761 = vld [vmem:[%s1760] sm:$0xff]
    %v1762 = vld [vmem:[%s1760 + $0x8] sm:$0xff]
    %v1763 = vld [vmem:[%s1760 + $0x10] sm:$0xff]
    %v1764 = vld [vmem:[%s1760 + $0x18] sm:$0xff]
    %v1766 = vsel %vm136, %v1757, 0
    %1768 = vmatprep.subr.mxu0 0.0
    %1769 = vmatpush1.msra.mxu0 %v1761
    %1770 = vmatprep.subr.mxu0 0.0
    %1771 = vmatpush1.msra.mxu0 %v1762
    %1772 = vmatprep.subr.mxu0 0.0
    %1773 = vmatpush1.msra.mxu0 %v1763
    %1774 = vmatprep.subr.mxu0 0.0
    %1775 = vmatpush1.msra.mxu0 %v1764
    %1776 = vmatprep.subr.mxu0 0.0
    %1777 = vmatpush1.msra.mxu0 0.0
    %1778 = vmatprep.subr.mxu0 0.0
    %1779 = vmatpush1.msra.mxu0 0.0
    %1780 = vmatprep.subr.mxu0 0.0
    %1781 = vmatpush1.msra.mxu0 0.0
    %1782 = vmatprep.subr.mxu0 0.0
    %1783 = vmatpush1.msra.mxu0 0.0
    %1784 = vmatprep.subr.mxu0 0.0
    %1785 = vmatpush1.msra.mxu0 0.0
    %1786 = vmatprep.subr.mxu0 0.0
    %1787 = vmatpush1.msra.mxu0 0.0
    %1788 = vmatprep.subr.mxu0 0.0
    %1789 = vmatpush1.msra.mxu0 0.0
    %1790 = vmatprep.subr.mxu0 0.0
    %1791 = vmatpush1.msra.mxu0 0.0
    %1792 = vmatprep.subr.mxu0 0.0
    %1793 = vmatpush1.msra.mxu0 0.0
    %1794 = vmatprep.subr.mxu0 0.0
    %1795 = vmatpush1.msra.mxu0 0.0
    %1796 = vmatprep.subr.mxu0 0.0
    %1797 = vmatpush1.msra.mxu0 0.0
    %1798 = vmatprep.subr.mxu0 0.0
    %1799 = vmatpush1.msra.mxu0 0.0
    %1800 = vmatprep.subr.mxu0 0.0
    %1801 = vmatpush1.msra.mxu0 0.0
    %1802 = vmatprep.subr.mxu0 0.0
    %1803 = vmatpush1.msra.mxu0 0.0
    %1804 = vmatprep.subr.mxu0 0.0
    %1805 = vmatpush1.msra.mxu0 0.0
    %1806 = vmatprep.subr.mxu0 0.0
    %1807 = vmatpush1.msra.mxu0 0.0
    %1808 = vmatprep.subr.mxu0 0.0
    %1809 = vmatpush1.msra.mxu0 0.0
    %1810 = vmatprep.subr.mxu0 0.0
    %1811 = vmatpush1.msra.mxu0 0.0
    %1812 = vmatprep.subr.mxu0 0.0
    %1813 = vmatpush1.msra.mxu0 0.0
    %1814 = vmatprep.subr.mxu0 0.0
    %1815 = vmatpush1.msra.mxu0 0.0
    %1816 = vmatprep.subr.mxu0 0.0
    %1817 = vmatpush1.msra.mxu0 0.0
    %1818 = vmatprep.subr.mxu0 0.0
    %1819 = vmatpush1.msra.mxu0 0.0
    %1820 = vmatprep.subr.mxu0 0.0
    %1821 = vmatpush1.msra.mxu0 0.0
    %1822 = vmatprep.subr.mxu0 0.0
    %1823 = vmatpush1.msra.mxu0 0.0
    %1824 = vmatprep.subr.mxu0 0.0
    %1825 = vmatpush1.msra.mxu0 0.0
    %1826 = vmatprep.subr.mxu0 0.0
    %1827 = vmatpush1.msra.mxu0 0.0
    %1828 = vmatprep.subr.mxu0 0.0
    %1829 = vmatpush1.msra.mxu0 0.0
    %1830 = vmatprep.subr.mxu0 0.0
    %1831 = vmatpush1.msra.mxu0 0.0
    %1832 = vmatprep.mubr.f32.mxu0 0.0
    %1833 = vmatmul.mubr.f32.gmra.mrb[0].mxu0 %v1766
    %v1834 = vpop.f32.mrb[0].mxu0
    %v1835 = vadd.f32 0.0, %v1834
    %v1836 = vpop.f32.mrb[0].mxu0
    %1837 = vdwg.mxu0
    %v1838 = vsel %vm210, %v1835, -inf
    %1839 = vmax.xlane.f32.xlu0 %v1838
    %v1840 = vpop.xlane.xlu0 %1839
    %v1841 = vsub.f32 %v1835, %v1840
    %v1842 = vmul.f32 %v1841, 1.442695
    %v1843 = vpow.pop %v1842
    %v1844 = vsel %vm210, %v1843, 0.0
    %1845 = vadd.xlane.f32.xlu0 %v1844
    %v1846 = vpop.xlane.xlu0 %1845
    %s1847 = scalar_lea.vmem %s3, 96
    %v1848 = vld [vmem:[%s1847] sm:$0xff]
    %v1849 = vld [vmem:[%s1847 + $0x8] sm:$0x3]
    %v1851 = vsel %vm222, %v1843, 0
    %v1854 = vsel %vm226, %v1849, 0
    %1856 = vmatprep.subr.mxu0 0.0
    %1857 = vmatpush1.msra.mxu0 %v1848
    %1858 = vmatprep.subr.mxu0 0.0
    %1859 = vmatpush1.msra.mxu0 %v1854
    %1860 = vmatprep.subr.mxu0 0.0
    %1861 = vmatpush1.msra.mxu0 0.0
    %1862 = vmatprep.subr.mxu0 0.0
    %1863 = vmatpush1.msra.mxu0 0.0
    %1864 = vmatprep.subr.mxu0 0.0
    %1865 = vmatpush1.msra.mxu0 0.0
    %1866 = vmatprep.subr.mxu0 0.0
    %1867 = vmatpush1.msra.mxu0 0.0
    %1868 = vmatprep.subr.mxu0 0.0
    %1869 = vmatpush1.msra.mxu0 0.0
    %1870 = vmatprep.subr.mxu0 0.0
    %1871 = vmatpush1.msra.mxu0 0.0
    %1872 = vmatprep.subr.mxu0 0.0
    %1873 = vmatpush1.msra.mxu0 0.0
    %1874 = vmatprep.subr.mxu0 0.0
    %1875 = vmatpush1.msra.mxu0 0.0
    %1876 = vmatprep.subr.mxu0 0.0
    %1877 = vmatpush1.msra.mxu0 0.0
    %1878 = vmatprep.subr.mxu0 0.0
    %1879 = vmatpush1.msra.mxu0 0.0
    %1880 = vmatprep.subr.mxu0 0.0
    %1881 = vmatpush1.msra.mxu0 0.0
    %1882 = vmatprep.subr.mxu0 0.0
    %1883 = vmatpush1.msra.mxu0 0.0
    %1884 = vmatprep.subr.mxu0 0.0
    %1885 = vmatpush1.msra.mxu0 0.0
    %1886 = vmatprep.subr.mxu0 0.0
    %1887 = vmatpush1.msra.mxu0 0.0
    %1888 = vmatprep.subr.mxu0 0.0
    %1889 = vmatpush1.msra.mxu0 0.0
    %1890 = vmatprep.subr.mxu0 0.0
    %1891 = vmatpush1.msra.mxu0 0.0
    %1892 = vmatprep.subr.mxu0 0.0
    %1893 = vmatpush1.msra.mxu0 0.0
    %1894 = vmatprep.subr.mxu0 0.0
    %1895 = vmatpush1.msra.mxu0 0.0
    %1896 = vmatprep.subr.mxu0 0.0
    %1897 = vmatpush1.msra.mxu0 0.0
    %1898 = vmatprep.subr.mxu0 0.0
    %1899 = vmatpush1.msra.mxu0 0.0
    %1900 = vmatprep.subr.mxu0 0.0
    %1901 = vmatpush1.msra.mxu0 0.0
    %1902 = vmatprep.subr.mxu0 0.0
    %1903 = vmatpush1.msra.mxu0 0.0
    %1904 = vmatprep.subr.mxu0 0.0
    %1905 = vmatpush1.msra.mxu0 0.0
    %1906 = vmatprep.subr.mxu0 0.0
    %1907 = vmatpush1.msra.mxu0 0.0
    %1908 = vmatprep.subr.mxu0 0.0
    %1909 = vmatpush1.msra.mxu0 0.0
    %1910 = vmatprep.subr.mxu0 0.0
    %1911 = vmatpush1.msra.mxu0 0.0
    %1912 = vmatprep.subr.mxu0 0.0
    %1913 = vmatpush1.msra.mxu0 0.0
    %1914 = vmatprep.subr.mxu0 0.0
    %1915 = vmatpush1.msra.mxu0 0.0
    %1916 = vmatprep.subr.mxu0 0.0
    %1917 = vmatpush1.msra.mxu0 0.0
    %1918 = vmatprep.subr.mxu0 0.0
    %1919 = vmatpush1.msra.mxu0 0.0
    %1920 = vmatprep.mubr.f32.mxu0 0.0
    %1921 = vmatmul.mubr.f32.gmra.mrb[0].mxu0 %v1851
    %v1922 = vpop.f32.mrb[0].mxu0
    %v1923 = vadd.f32 0.0, %v1922
    %v1924 = vpop.f32.mrb[0].mxu0
    %1925 = vdwg.mxu0
    %v1926 = vrcp.pop %v1846
    %v1927 = vmul.f32 %v1923, %v1926
    %s1928 = scalar_lea.vmem %s1, 1792
    %v1929 = vld [vmem:[%s1928] sm:$0xff]
    %v1930 = vld [vmem:[%s1928 + $0x8] sm:$0xff]
    %v1931 = vld [vmem:[%s1928 + $0x10] sm:$0xff]
    %v1932 = vld [vmem:[%s1928 + $0x18] sm:$0xff]
    %v1933 = vld [vmem:[%s1928 + $0x20] sm:$0xff]
    %v1934 = vld [vmem:[%s1928 + $0x28] sm:$0xff]
    %v1935 = vld [vmem:[%s1928 + $0x30] sm:$0xff]
    %v1936 = vld [vmem:[%s1928 + $0x38] sm:$0xff]
    %v1937 = vld [vmem:[%s1928 + $0x40] sm:$0xff]
    %v1938 = vld [vmem:[%s1928 + $0x48] sm:$0xff]
    %v1939 = vld [vmem:[%s1928 + $0x50] sm:$0xff]
    %v1940 = vld [vmem:[%s1928 + $0x58] sm:$0xff]
    %v1941 = vld [vmem:[%s1928 + $0x60] sm:$0xff]
    %v1942 = vld [vmem:[%s1928 + $0x68] sm:$0xff]
    %v1943 = vld [vmem:[%s1928 + $0x70] sm:$0xff]
    %v1944 = vld [vmem:[%s1928 + $0x78] sm:$0xff]
    %v1945 = vld [vmem:[%s1928 + $0x80] sm:$0xff]
    %v1946 = vld [vmem:[%s1928 + $0x88] sm:$0xff]
    %v1947 = vld [vmem:[%s1928 + $0x90] sm:$0xff]
    %v1948 = vld [vmem:[%s1928 + $0x98] sm:$0xff]
    %v1949 = vld [vmem:[%s1928 + $0xa0] sm:$0xff]
    %v1950 = vld [vmem:[%s1928 + $0xa8] sm:$0xff]
    %v1951 = vld [vmem:[%s1928 + $0xb0] sm:$0xff]
    %v1952 = vld [vmem:[%s1928 + $0xb8] sm:$0xff]
    %v1953 = vld [vmem:[%s1928 + $0xc0] sm:$0xff]
    %v1954 = vld [vmem:[%s1928 + $0xc8] sm:$0xff]
    %v1955 = vld [vmem:[%s1928 + $0xd0] sm:$0xff]
    %v1956 = vld [vmem:[%s1928 + $0xd8] sm:$0xff]
    %v1957 = vld [vmem:[%s1928 + $0xe0] sm:$0xff]
    %v1958 = vld [vmem:[%s1928 + $0xe8] sm:$0xff]
    %v1959 = vld [vmem:[%s1928 + $0xf0] sm:$0xff]
    %v1960 = vld [vmem:[%s1928 + $0xf8] sm:$0xff]
    %1961 = vmatprep.subr.mxu0 0.0
    %1962 = vmatpush1.msra.mxu0 %v1929
    %1963 = vmatprep.subr.mxu0 0.0
    %1964 = vmatpush1.msra.mxu0 %v1930
    %1965 = vmatprep.subr.mxu0 0.0
    %1966 = vmatpush1.msra.mxu0 %v1931
    %1967 = vmatprep.subr.mxu0 0.0
    %1968 = vmatpush1.msra.mxu0 %v1932
    %1969 = vmatprep.subr.mxu0 0.0
    %1970 = vmatpush1.msra.mxu0 %v1933
    %1971 = vmatprep.subr.mxu0 0.0
    %1972 = vmatpush1.msra.mxu0 %v1934
    %1973 = vmatprep.subr.mxu0 0.0
    %1974 = vmatpush1.msra.mxu0 %v1935
    %1975 = vmatprep.subr.mxu0 0.0
    %1976 = vmatpush1.msra.mxu0 %v1936
    %1977 = vmatprep.subr.mxu0 0.0
    %1978 = vmatpush1.msra.mxu0 %v1937
    %1979 = vmatprep.subr.mxu0 0.0
    %1980 = vmatpush1.msra.mxu0 %v1938
    %1981 = vmatprep.subr.mxu0 0.0
    %1982 = vmatpush1.msra.mxu0 %v1939
    %1983 = vmatprep.subr.mxu0 0.0
    %1984 = vmatpush1.msra.mxu0 %v1940
    %1985 = vmatprep.subr.mxu0 0.0
    %1986 = vmatpush1.msra.mxu0 %v1941
    %1987 = vmatprep.subr.mxu0 0.0
    %1988 = vmatpush1.msra.mxu0 %v1942
    %1989 = vmatprep.subr.mxu0 0.0
    %1990 = vmatpush1.msra.mxu0 %v1943
    %1991 = vmatprep.subr.mxu0 0.0
    %1992 = vmatpush1.msra.mxu0 %v1944
    %1993 = vmatprep.subr.mxu0 0.0
    %1994 = vmatpush1.msra.mxu0 %v1945
    %1995 = vmatprep.subr.mxu0 0.0
    %1996 = vmatpush1.msra.mxu0 %v1946
    %1997 = vmatprep.subr.mxu0 0.0
    %1998 = vmatpush1.msra.mxu0 %v1947
    %1999 = vmatprep.subr.mxu0 0.0
    %2000 = vmatpush1.msra.mxu0 %v1948
    %2001 = vmatprep.subr.mxu0 0.0
    %2002 = vmatpush1.msra.mxu0 %v1949
    %2003 = vmatprep.subr.mxu0 0.0
    %2004 = vmatpush1.msra.mxu0 %v1950
    %2005 = vmatprep.subr.mxu0 0.0
    %2006 = vmatpush1.msra.mxu0 %v1951
    %2007 = vmatprep.subr.mxu0 0.0
    %2008 = vmatpush1.msra.mxu0 %v1952
    %2009 = vmatprep.subr.mxu0 0.0
    %2010 = vmatpush1.msra.mxu0 %v1953
    %2011 = vmatprep.subr.mxu0 0.0
    %2012 = vmatpush1.msra.mxu0 %v1954
    %2013 = vmatprep.subr.mxu0 0.0
    %2014 = vmatpush1.msra.mxu0 %v1955
    %2015 = vmatprep.subr.mxu0 0.0
    %2016 = vmatpush1.msra.mxu0 %v1956
    %2017 = vmatprep.subr.mxu0 0.0
    %2018 = vmatpush1.msra.mxu0 %v1957
    %2019 = vmatprep.subr.mxu0 0.0
    %2020 = vmatpush1.msra.mxu0 %v1958
    %2021 = vmatprep.subr.mxu0 0.0
    %2022 = vmatpush1.msra.mxu0 %v1959
    %2023 = vmatprep.subr.mxu0 0.0
    %2024 = vmatpush1.msra.mxu0 %v1960
    %2025 = vmatprep.mubr.f32.mxu0 %v59
    %2026 = vmatmul.mubr.f32.gmra.mrb[0].mxu0 %v58
    %v2027 = vpop.f32.mrb[0].mxu0
    %v2028 = vadd.f32 0.0, %v2027
    %v2029 = vpop.f32.mrb[0].mxu0
    %2030 = vdwg.mxu0
    %s2031 = scalar_lea.vmem %s2, 224
    %v2032 = vld [vmem:[%s2031] sm:$0xff]
    %v2033 = vld [vmem:[%s2031 + $0x8] sm:$0xff]
    %v2034 = vld [vmem:[%s2031 + $0x10] sm:$0xff]
    %v2035 = vld [vmem:[%s2031 + $0x18] sm:$0xff]
    %v2037 = vsel %vm136, %v2028, 0
    %2039 = vmatprep.subr.mxu0 0.0
    %2040 = vmatpush1.msra.mxu0 %v2032
    %2041 = vmatprep.subr.mxu0 0.0
    %2042 = vmatpush1.msra.mxu0 %v2033
    %2043 = vmatprep.subr.mxu0 0.0
    %2044 = vmatpush1.msra.mxu0 %v2034
    %2045 = vmatprep.subr.mxu0 0.0
    %2046 = vmatpush1.msra.mxu0 %v2035
    %2047 = vmatprep.subr.mxu0 0.0
    %2048 = vmatpush1.msra.mxu0 0.0
    %2049 = vmatprep.subr.mxu0 0.0
    %2050 = vmatpush1.msra.mxu0 0.0
    %2051 = vmatprep.subr.mxu0 0.0
    %2052 = vmatpush1.msra.mxu0 0.0
    %2053 = vmatprep.subr.mxu0 0.0
    %2054 = vmatpush1.msra.mxu0 0.0
    %2055 = vmatprep.subr.mxu0 0.0
    %2056 = vmatpush1.msra.mxu0 0.0
    %2057 = vmatprep.subr.mxu0 0.0
    %2058 = vmatpush1.msra.mxu0 0.0
    %2059 = vmatprep.subr.mxu0 0.0
    %2060 = vmatpush1.msra.mxu0 0.0
    %2061 = vmatprep.subr.mxu0 0.0
    %2062 = vmatpush1.msra.mxu0 0.0
    %2063 = vmatprep.subr.mxu0 0.0
    %2064 = vmatpush1.msra.mxu0 0.0
    %2065 = vmatprep.subr.mxu0 0.0
    %2066 = vmatpush1.msra.mxu0 0.0
    %2067 = vmatprep.subr.mxu0 0.0
    %2068 = vmatpush1.msra.mxu0 0.0
    %2069 = vmatprep.subr.mxu0 0.0
    %2070 = vmatpush1.msra.mxu0 0.0
    %2071 = vmatprep.subr.mxu0 0.0
    %2072 = vmatpush1.msra.mxu0 0.0
    %2073 = vmatprep.subr.mxu0 0.0
    %2074 = vmatpush1.msra.mxu0 0.0
    %2075 = vmatprep.subr.mxu0 0.0
    %2076 = vmatpush1.msra.mxu0 0.0
    %2077 = vmatprep.subr.mxu0 0.0
    %2078 = vmatpush1.msra.mxu0 0.0
    %2079 = vmatprep.subr.mxu0 0.0
    %2080 = vmatpush1.msra.mxu0 0.0
    %2081 = vmatprep.subr.mxu0 0.0
    %2082 = vmatpush1.msra.mxu0 0.0
    %2083 = vmatprep.subr.mxu0 0.0
    %2084 = vmatpush1.msra.mxu0 0.0
    %2085 = vmatprep.subr.mxu0 0.0
    %2086 = vmatpush1.msra.mxu0 0.0
    %2087 = vmatprep.subr.mxu0 0.0
    %2088 = vmatpush1.msra.mxu0 0.0
    %2089 = vmatprep.subr.mxu0 0.0
    %2090 = vmatpush1.msra.mxu0 0.0
    %2091 = vmatprep.subr.mxu0 0.0
    %2092 = vmatpush1.msra.mxu0 0.0
    %2093 = vmatprep.subr.mxu0 0.0
    %2094 = vmatpush1.msra.mxu0 0.0
    %2095 = vmatprep.subr.mxu0 0.0
    %2096 = vmatpush1.msra.mxu0 0.0
    %2097 = vmatprep.subr.mxu0 0.0
    %2098 = vmatpush1.msra.mxu0 0.0
    %2099 = vmatprep.subr.mxu0 0.0
    %2100 = vmatpush1.msra.mxu0 0.0
    %2101 = vmatprep.subr.mxu0 0.0
    %2102 = vmatpush1.msra.mxu0 0.0
    %2103 = vmatprep.mubr.f32.mxu0 0.0
    %2104 = vmatmul.mubr.f32.gmra.mrb[0].mxu0 %v2037
    %v2105 = vpop.f32.mrb[0].mxu0
    %v2106 = vadd.f32 0.0, %v2105
    %v2107 = vpop.f32.mrb[0].mxu0
    %2108 = vdwg.mxu0
    %v2109 = vsel %vm210, %v2106, -inf
    %2110 = vmax.xlane.f32.xlu0 %v2109
    %v2111 = vpop.xlane.xlu0 %2110
    %v2112 = vsub.f32 %v2106, %v2111
    %v2113 = vmul.f32 %v2112, 1.442695
    %v2114 = vpow.pop %v2113
    %v2115 = vsel %vm210, %v2114, 0.0
    %2116 = vadd.xlane.f32.xlu0 %v2115
    %v2117 = vpop.xlane.xlu0 %2116
    %s2118 = scalar_lea.vmem %s3, 112
    %v2119 = vld [vmem:[%s2118] sm:$0xff]
    %v2120 = vld [vmem:[%s2118 + $0x8] sm:$0x3]
    %v2122 = vsel %vm222, %v2114, 0
    %v2125 = vsel %vm226, %v2120, 0
    %2127 = vmatprep.subr.mxu0 0.0
    %2128 = vmatpush1.msra.mxu0 %v2119
    %2129 = vmatprep.subr.mxu0 0.0
    %2130 = vmatpush1.msra.mxu0 %v2125
    %2131 = vmatprep.subr.mxu0 0.0
    %2132 = vmatpush1.msra.mxu0 0.0
    %2133 = vmatprep.subr.mxu0 0.0
    %2134 = vmatpush1.msra.mxu0 0.0
    %2135 = vmatprep.subr.mxu0 0.0
    %2136 = vmatpush1.msra.mxu0 0.0
    %2137 = vmatprep.subr.mxu0 0.0
    %2138 = vmatpush1.msra.mxu0 0.0
    %2139 = vmatprep.subr.mxu0 0.0
    %2140 = vmatpush1.msra.mxu0 0.0
    %2141 = vmatprep.subr.mxu0 0.0
    %2142 = vmatpush1.msra.mxu0 0.0
    %2143 = vmatprep.subr.mxu0 0.0
    %2144 = vmatpush1.msra.mxu0 0.0
    %2145 = vmatprep.subr.mxu0 0.0
    %2146 = vmatpush1.msra.mxu0 0.0
    %2147 = vmatprep.subr.mxu0 0.0
    %2148 = vmatpush1.msra.mxu0 0.0
    %2149 = vmatprep.subr.mxu0 0.0
    %2150 = vmatpush1.msra.mxu0 0.0
    %2151 = vmatprep.subr.mxu0 0.0
    %2152 = vmatpush1.msra.mxu0 0.0
    %2153 = vmatprep.subr.mxu0 0.0
    %2154 = vmatpush1.msra.mxu0 0.0
    %2155 = vmatprep.subr.mxu0 0.0
    %2156 = vmatpush1.msra.mxu0 0.0
    %2157 = vmatprep.subr.mxu0 0.0
    %2158 = vmatpush1.msra.mxu0 0.0
    %2159 = vmatprep.subr.mxu0 0.0
    %2160 = vmatpush1.msra.mxu0 0.0
    %2161 = vmatprep.subr.mxu0 0.0
    %2162 = vmatpush1.msra.mxu0 0.0
    %2163 = vmatprep.subr.mxu0 0.0
    %2164 = vmatpush1.msra.mxu0 0.0
    %2165 = vmatprep.subr.mxu0 0.0
    %2166 = vmatpush1.msra.mxu0 0.0
    %2167 = vmatprep.subr.mxu0 0.0
    %2168 = vmatpush1.msra.mxu0 0.0
    %2169 = vmatprep.subr.mxu0 0.0
    %2170 = vmatpush1.msra.mxu0 0.0
    %2171 = vmatprep.subr.mxu0 0.0
    %2172 = vmatpush1.msra.mxu0 0.0
    %2173 = vmatprep.subr.mxu0 0.0
    %2174 = vmatpush1.msra.mxu0 0.0
    %2175 = vmatprep.subr.mxu0 0.0
    %2176 = vmatpush1.msra.mxu0 0.0
    %2177 = vmatprep.subr.mxu0 0.0
    %2178 = vmatpush1.msra.mxu0 0.0
    %2179 = vmatprep.subr.mxu0 0.0
    %2180 = vmatpush1.msra.mxu0 0.0
    %2181 = vmatprep.subr.mxu0 0.0
    %2182 = vmatpush1.msra.mxu0 0.0
    %2183 = vmatprep.subr.mxu0 0.0
    %2184 = vmatpush1.msra.mxu0 0.0
    %2185 = vmatprep.subr.mxu0 0.0
    %2186 = vmatpush1.msra.mxu0 0.0
    %2187 = vmatprep.subr.mxu0 0.0
    %2188 = vmatpush1.msra.mxu0 0.0
    %2189 = vmatprep.subr.mxu0 0.0
    %2190 = vmatpush1.msra.mxu0 0.0
    %2191 = vmatprep.mubr.f32.mxu0 0.0
    %2192 = vmatmul.mubr.f32.gmra.mrb[0].mxu0 %v2122
    %v2193 = vpop.f32.mrb[0].mxu0
    %v2194 = vadd.f32 0.0, %v2193
    %v2195 = vpop.f32.mrb[0].mxu0
    %2196 = vdwg.mxu0
    %v2197 = vrcp.pop %v2117
    %v2198 = vmul.f32 %v2194, %v2197
    %2200 = vrot.lane.b32.xlu0 %v572, 32
    %v2201 = vpop.permute.xlu0 %2200
    %2204 = vrot.lane.b32.xlu0 %v843, 64
    %v2205 = vpop.permute.xlu0 %2204
    %2208 = vrot.lane.b32.xlu0 %v1114, 96
    %v2209 = vpop.permute.xlu0 %2208
    %2212 = vrot.lane.b32.xlu0 %v1656, 32
    %v2213 = vpop.permute.xlu0 %2212
    %2216 = vrot.lane.b32.xlu0 %v1927, 64
    %v2217 = vpop.permute.xlu0 %2216
    %2220 = vrot.lane.b32.xlu0 %v2198, 96
    %v2221 = vpop.permute.xlu0 %2220
    %v2223 = vsel %vm136, %v301, %v2201
    %vm2224 = vcmask 523264
    %v2225 = vsel %vm2224, %v2223, %v2205
    %vm2226 = vcmask 785408
    %v2227 = vsel %vm2226, %v2225, %v2209
    %v2228 = vsel %vm136, %v1385, %v2213
    %v2229 = vsel %vm2224, %v2228, %v2217
    %v2230 = vsel %vm2226, %v2229, %v2221
    %v2233 = vcombine.low %v2227, %v2230
    %v2235 = vunpack.c.l.s4 1983009808
    %v2236 = vunpack.c.0.s8 %v2235
    %v2237 = vlaneseq
    %v2238 = vshrl.u32 %v2237, 7
    %v2239 = vsub.s32 %v2236, %v2238
    %v2240 = vrot.slane %v2233, %v2239
    %2242 = vst [vmem:[#allocation2] sm:$0xf] %v2240
    // Predicated region
    $region18: #{tpu_custom_call.1} parent=1 // pred_check
      _
    $region19: #{tpu_custom_call.1} parent=1 // pred_check_branch
      %2244 = sbr.rel (0) target = $region21
    $region20: #{tpu_custom_call.1} parent=1 // pred_region
      %s2246 = ssub.s32 64, 64
      %2247 = vsyncadd [#allocation3], %s2246
      %s2249 = sshll.u32 [#allocation2], 4
      %s2250 = int_to_ptr.vmem [resolvable:$true] %s2249
      %2252 = dma.vmem_to_hbm [thread:$0]  %s2250, 64, %s4, [#allocation3]
    $region21: #{tpu_custom_call.1} parent=1 // pred_fallthru
      _
    // Predicated region
    $region22: #{tpu_custom_call.1} parent=1 // pred_check
      _
    $region23: #{tpu_custom_call.1} parent=1 // pred_check_branch
      %2254 = sbr.rel (0) target = $region25
    $region24: #{tpu_custom_call.1} parent=1 // pred_region
      %2255 = dma.done [#allocation3], 64
    $region25: #{tpu_custom_call.1} parent=1 // pred_fallthru
      _
    %2256 = vsyncpa [#allocation3], 1

</llo_original>
